<compile_context>
chip_gen: v6e
topology: v6e:2x2x1
jax: 0.10.0
libtpu: 0.0.40
codegen_flags: <defaults>
</compile_context>

<pallas_src>
import functools

import jax
import jax.numpy as jnp
from jax.experimental import pallas as pl
from jax.experimental.pallas import tpu as pltpu

# SELU constants (match torch.nn.functional.selu)
_SELU_ALPHA = 1.6732632423543772
_SELU_SCALE = 1.0507009873554805

# Logical (PyTorch) feature dims; hidden dims are lane-padded to 128 so the inner
# matmuls run on full 128-lane tiles. The output dim stays at its logical 140
# (== full array dim, so the BlockSpec is legal; masked store only touches 12 of
# the last 128 lanes).
D_IN, D_H0, D_H1, D_OUT = 30, 70, 100, 140
P_H0, P_H1 = 128, 128


def _selu(x):
    # Clamp the exp argument so large positive x never produces inf in the
    # discarded branch of the select.
    return _SELU_SCALE * jnp.where(
        x > 0, x, _SELU_ALPHA * (jnp.exp(jnp.minimum(x, 0.0)) - 1.0)
    )


def decoder_kernel(x_ref, w0_ref, b0_ref, w1_ref, b1_ref, w2_ref, b2_ref, o_ref):
    # x arrives f32 straight from HBM; cast to bf16 in-kernel.
    x = x_ref[...].astype(jnp.bfloat16)

    # layer 0: Linear(30 -> 70 [pad 128]) + SELU   (bf16 MXU matmul, f32 accumulate)
    h0 = jnp.dot(x, w0_ref[...], preferred_element_type=jnp.float32) + b0_ref[...]
    h0 = _selu(h0)

    # layer 1: Linear(70 -> 100 [pad 128]) + SELU
    h1 = (
        jnp.dot(h0.astype(jnp.bfloat16), w1_ref[...], preferred_element_type=jnp.float32)
        + b1_ref[...]
    )
    h1 = _selu(h1)

    # layer 2: Linear(100 -> 140) + SELU (output kept at logical width 140)
    h2 = (
        jnp.dot(h1.astype(jnp.bfloat16), w2_ref[...], preferred_element_type=jnp.float32)
        + b2_ref[...]
    )
    h2 = _selu(h2)

    # Dropout(p=0.05) is an inference-time identity.
    o_ref[...] = h2.astype(o_ref.dtype)


def _round_up(a, m):
    return ((a + m - 1) // m) * m


def _cdiv(a, b):
    return (a + b - 1) // b


def _pad2(a, rows, cols):
    return jnp.pad(a, ((0, rows - a.shape[0]), (0, cols - a.shape[1])))


def prepare_params(params):
    """One-time (model-load) padding + bf16 cast of weights/biases.

    Hoisted out of the per-call wrapper so the forward pass is a single
    pallas_call (plus at most a batch row pad / slice). Padded columns/rows are
    zero, and SELU(0) == 0, so numerics are unchanged.
    Weights are stored [in, out] (transposed vs. PyTorch's [out, in]).
    """
    w0 = _pad2(params["w0"], D_IN, P_H0).astype(jnp.bfloat16)
    w1 = _pad2(params["w1"], P_H0, P_H1).astype(jnp.bfloat16)
    w2 = _pad2(params["w2"], P_H1, D_OUT).astype(jnp.bfloat16)
    b0 = jnp.pad(params["b0"], (0, P_H0 - D_H0)).reshape(1, P_H0).astype(jnp.float32)
    b1 = jnp.pad(params["b1"], (0, P_H1 - D_H1)).reshape(1, P_H1).astype(jnp.float32)
    b2 = params["b2"].reshape(1, D_OUT).astype(jnp.float32)
    return (w0, b0, w1, b1, w2, b2)


def _pick_tile_b(B, tile_cap):
    """Batch-tile policy.

    Tiny batches: one step, pad to a multiple of 16 (bf16 sublane packing).
    Otherwise: tile is a multiple of 256 (fills the MXU M dim and amortizes the
    ~600-cycle per-grid-step overhead), capped at tile_cap, with an even grid
    count whenever possible so v7x's two TensorCores split the parallel batch
    axis evenly.
    """
    if B <= 256:
        return max(16, _round_up(B, 16))
    tile = min(tile_cap, _round_up(_cdiv(B, 2), 256))
    n = _cdiv(B, tile)
    if n > 2 and n % 2:
        tile = _round_up(_cdiv(B, n + 1), 256)
    return tile


@functools.partial(jax.jit, static_argnames=("tile_cap",))
def decoder_forward(x, prepared_params, *, tile_cap=1024):
    """x: (B, 30) float32.  prepared_params: output of prepare_params()."""
    B = x.shape[0]
    tile_b = _pick_tile_b(B, tile_cap)
    Bp = _round_up(B, tile_b)
    if Bp != B:
        x = jnp.pad(x, ((0, Bp - B), (0, 0)))  # ragged batch: zero-pad rows

    w0, b0, w1, b1, w2, b2 = prepared_params
    grid = (Bp // tile_b,)

    cost = pl.CostEstimate(
        flops=2 * Bp * (D_IN * P_H0 + P_H0 * P_H1 + P_H1 * D_OUT),
        transcendentals=Bp * (P_H0 + P_H1 + D_OUT),
        bytes_accessed=(
            Bp * (D_IN * 4 + D_OUT * 4)
            + (D_IN * P_H0 + P_H0 * P_H1 + P_H1 * D_OUT) * 2
            + (P_H0 + P_H1 + D_OUT) * 4
        ),
    )

    out = pl.pallas_call(
        decoder_kernel,
        out_shape=jax.ShapeDtypeStruct((Bp, D_OUT), jnp.float32),
        grid_spec=pltpu.PrefetchScalarGridSpec(
            num_scalar_prefetch=0,
            grid=grid,
            in_specs=[
                pl.BlockSpec((tile_b, D_IN), lambda i: (i, 0)),   # x tile (f32)
                pl.BlockSpec((D_IN, P_H0), lambda i: (0, 0)),     # w0 (grid-invariant)
                pl.BlockSpec((1, P_H0), lambda i: (0, 0)),        # b0
                pl.BlockSpec((P_H0, P_H1), lambda i: (0, 0)),     # w1
                pl.BlockSpec((1, P_H1), lambda i: (0, 0)),        # b1
                pl.BlockSpec((P_H1, D_OUT), lambda i: (0, 0)),    # w2
                pl.BlockSpec((1, D_OUT), lambda i: (0, 0)),       # b2
            ],
            out_specs=pl.BlockSpec((tile_b, D_OUT), lambda i: (i, 0)),
        ),
        compiler_params=pltpu.CompilerParams(
            # Batch axis shards across the two v7x TensorCores; no-op on v5e/v6e.
            dimension_semantics=("parallel",),
            # vmem_limit_bytes only needed if tile_cap is swept above ~4096 on
            # v5e (16 MiB default scoped VMEM); at tile_cap=1024 total VMEM is ~2 MiB.
        ),
        cost_estimate=cost,
    )(x, w0, b0, w1, b1, w2, b2)

    # Strip only the batch-row padding (no lane slice needed anymore).
    return out if Bp == B else out[:B]


def init_params(key):
    """Deterministic init mimicking nn.Linear default: U(-1/sqrt(fan_in), 1/sqrt(fan_in))."""
    dims = [(D_IN, D_H0), (D_H0, D_H1), (D_H1, D_OUT)]
    params = {}
    keys = jax.random.split(key, 2 * len(dims))
    for idx, (din, dout) in enumerate(dims):
        bound = 1.0 / jnp.sqrt(din)
        params[f"w{idx}"] = jax.random.uniform(
            keys[2 * idx], (din, dout), jnp.float32, -bound, bound
        )
        params[f"b{idx}"] = jax.random.uniform(
            keys[2 * idx + 1], (dout,), jnp.float32, -bound, bound
        )
    return params


def decoder_reference(x, params):
    """Pure-JAX reference using the same bf16-operand / f32-accumulate numerics."""
    h = x
    for idx in range(3):
        w = params[f"w{idx}"].astype(jnp.bfloat16)
        h = jnp.dot(h.astype(jnp.bfloat16), w, preferred_element_type=jnp.float32)
        h = h + params[f"b{idx}"]
        h = _selu(h)
    return h


if __name__ == "__main__":
    key = jax.random.PRNGKey(0)
    k_param, k_x = jax.random.split(key)

    params = init_params(k_param)
    prepared = prepare_params(params)  # one-time model-load prep

    batch = 500  # intentionally NOT a tile multiple: exercises ragged padding; grid = 2 steps
    x = jax.random.normal(k_x, (batch, D_IN), dtype=jnp.float32)

    out = decoder_forward(x, prepared)
    out = jax.block_until_ready(out)

    ref = decoder_reference(x, params)
    assert out.shape == (batch, D_OUT), out.shape
    err = float(jnp.max(jnp.abs(out - ref)))
    assert err < 1e-3, err

    print("KERNEL_OK")
</pallas_src>

<mosaic_0001>
module attributes {stable_mosaic.version = 11 : i64} {
  func.func @decoder_kernel(%arg0: i32, %arg1: memref<256x30xf32, #tpu.memory_space<vmem>>, %arg2: memref<30x128xbf16, #tpu.memory_space<vmem>>, %arg3: memref<1x128xf32, #tpu.memory_space<vmem>>, %arg4: memref<128x128xbf16, #tpu.memory_space<vmem>>, %arg5: memref<1x128xf32, #tpu.memory_space<vmem>>, %arg6: memref<128x140xbf16, #tpu.memory_space<vmem>>, %arg7: memref<1x140xf32, #tpu.memory_space<vmem>>, %arg8: memref<256x140xf32, #tpu.memory_space<vmem>>) attributes {dimension_semantics = [#tpu.dimension_semantics<parallel>], iteration_bounds = array<i64: 2>, scalar_prefetch = 0 : i64, scratch_operands = 0 : i64, tpu.core_type = #tpu.core_type<tc>, window_params = [{transform_indices = @transform_0, window_bounds = array<i64: 256, 30>}, {pipeline_mode = #tpu.pipeline_mode<synchronous>, transform_indices = @transform_1, window_bounds = array<i64: 30, 128>}, {pipeline_mode = #tpu.pipeline_mode<synchronous>, transform_indices = @transform_2, window_bounds = array<i64: 1, 128>}, {pipeline_mode = #tpu.pipeline_mode<synchronous>, transform_indices = @transform_3, window_bounds = array<i64: 128, 128>}, {pipeline_mode = #tpu.pipeline_mode<synchronous>, transform_indices = @transform_4, window_bounds = array<i64: 1, 128>}, {pipeline_mode = #tpu.pipeline_mode<synchronous>, transform_indices = @transform_5, window_bounds = array<i64: 128, 140>}, {pipeline_mode = #tpu.pipeline_mode<synchronous>, transform_indices = @transform_6, window_bounds = array<i64: 1, 140>}, {transform_indices = @transform_7, window_bounds = array<i64: 256, 140>}]} {
    %c0 = arith.constant 0 : index
    %c0_0 = arith.constant 0 : index
    %0 = vector.load %arg1[%c0, %c0_0] : memref<256x30xf32, #tpu.memory_space<vmem>>, vector<256x30xf32>
    %1 = arith.truncf %0 : vector<256x30xf32> to vector<256x30xbf16>
    %c0_1 = arith.constant 0 : index
    %c0_2 = arith.constant 0 : index
    %2 = vector.load %arg2[%c0_1, %c0_2] : memref<30x128xbf16, #tpu.memory_space<vmem>>, vector<30x128xbf16>
    %cst = arith.constant dense<0.000000e+00> : vector<256x128xf32>
    %3 = tpu.matmul %1, %2, %cst {dimension_numbers = #tpu.dot_dimension_numbers<[1], [0], [0], [1], [0, 0, 1, 1], [], []>} : vector<256x30xbf16>, vector<30x128xbf16>, vector<256x128xf32> -> vector<256x128xf32>
    %c0_3 = arith.constant 0 : index
    %c0_4 = arith.constant 0 : index
    %4 = vector.load %arg3[%c0_3, %c0_4] : memref<1x128xf32, #tpu.memory_space<vmem>>, vector<1x128xf32>
    %5 = vector.broadcast %4 : vector<1x128xf32> to vector<256x128xf32>
    %6 = arith.addf %3, %5 : vector<256x128xf32>
    %cst_5 = arith.constant 0.000000e+00 : f32
    %7 = vector.broadcast %cst_5 : f32 to vector<256x128xf32>
    %8 = arith.cmpf ogt, %6, %7 : vector<256x128xf32>
    %cst_6 = arith.constant 0.000000e+00 : f32
    %9 = vector.broadcast %cst_6 : f32 to vector<256x128xf32>
    %10 = arith.minimumf %6, %9 : vector<256x128xf32>
    %11 = math.exp %10 : vector<256x128xf32>
    %cst_7 = arith.constant 1.000000e+00 : f32
    %12 = vector.broadcast %cst_7 : f32 to vector<256x128xf32>
    %13 = arith.subf %11, %12 : vector<256x128xf32>
    %cst_8 = arith.constant 1.67326319 : f32
    %14 = vector.broadcast %cst_8 : f32 to vector<256x128xf32>
    %15 = arith.mulf %14, %13 : vector<256x128xf32>
    %16 = arith.select %8, %6, %15 : vector<256x128xi1>, vector<256x128xf32>
    %cst_9 = arith.constant 1.05070102 : f32
    %17 = vector.broadcast %cst_9 : f32 to vector<256x128xf32>
    %18 = arith.mulf %17, %16 : vector<256x128xf32>
    %19 = arith.truncf %18 : vector<256x128xf32> to vector<256x128xbf16>
    %c0_10 = arith.constant 0 : index
    %c0_11 = arith.constant 0 : index
    %20 = vector.load %arg4[%c0_10, %c0_11] : memref<128x128xbf16, #tpu.memory_space<vmem>>, vector<128x128xbf16>
    %cst_12 = arith.constant dense<0.000000e+00> : vector<256x128xf32>
    %21 = tpu.matmul %19, %20, %cst_12 {dimension_numbers = #tpu.dot_dimension_numbers<[1], [0], [0], [1], [0, 0, 1, 1], [], []>} : vector<256x128xbf16>, vector<128x128xbf16>, vector<256x128xf32> -> vector<256x128xf32>
    %c0_13 = arith.constant 0 : index
    %c0_14 = arith.constant 0 : index
    %22 = vector.load %arg5[%c0_13, %c0_14] : memref<1x128xf32, #tpu.memory_space<vmem>>, vector<1x128xf32>
    %23 = vector.broadcast %22 : vector<1x128xf32> to vector<256x128xf32>
    %24 = arith.addf %21, %23 : vector<256x128xf32>
    %cst_15 = arith.constant 0.000000e+00 : f32
    %25 = vector.broadcast %cst_15 : f32 to vector<256x128xf32>
    %26 = arith.cmpf ogt, %24, %25 : vector<256x128xf32>
    %cst_16 = arith.constant 0.000000e+00 : f32
    %27 = vector.broadcast %cst_16 : f32 to vector<256x128xf32>
    %28 = arith.minimumf %24, %27 : vector<256x128xf32>
    %29 = math.exp %28 : vector<256x128xf32>
    %cst_17 = arith.constant 1.000000e+00 : f32
    %30 = vector.broadcast %cst_17 : f32 to vector<256x128xf32>
    %31 = arith.subf %29, %30 : vector<256x128xf32>
    %cst_18 = arith.constant 1.67326319 : f32
    %32 = vector.broadcast %cst_18 : f32 to vector<256x128xf32>
    %33 = arith.mulf %32, %31 : vector<256x128xf32>
    %34 = arith.select %26, %24, %33 : vector<256x128xi1>, vector<256x128xf32>
    %cst_19 = arith.constant 1.05070102 : f32
    %35 = vector.broadcast %cst_19 : f32 to vector<256x128xf32>
    %36 = arith.mulf %35, %34 : vector<256x128xf32>
    %37 = arith.truncf %36 : vector<256x128xf32> to vector<256x128xbf16>
    %c0_20 = arith.constant 0 : index
    %c0_21 = arith.constant 0 : index
    %38 = vector.load %arg6[%c0_20, %c0_21] : memref<128x140xbf16, #tpu.memory_space<vmem>>, vector<128x140xbf16>
    %cst_22 = arith.constant dense<0.000000e+00> : vector<256x140xf32>
    %39 = tpu.matmul %37, %38, %cst_22 {dimension_numbers = #tpu.dot_dimension_numbers<[1], [0], [0], [1], [0, 0, 1, 1], [], []>} : vector<256x128xbf16>, vector<128x140xbf16>, vector<256x140xf32> -> vector<256x140xf32>
    %c0_23 = arith.constant 0 : index
    %c0_24 = arith.constant 0 : index
    %40 = vector.load %arg7[%c0_23, %c0_24] : memref<1x140xf32, #tpu.memory_space<vmem>>, vector<1x140xf32>
    %41 = vector.broadcast %40 : vector<1x140xf32> to vector<256x140xf32>
    %42 = arith.addf %39, %41 : vector<256x140xf32>
    %cst_25 = arith.constant 0.000000e+00 : f32
    %43 = vector.broadcast %cst_25 : f32 to vector<256x140xf32>
    %44 = arith.cmpf ogt, %42, %43 : vector<256x140xf32>
    %cst_26 = arith.constant 0.000000e+00 : f32
    %45 = vector.broadcast %cst_26 : f32 to vector<256x140xf32>
    %46 = arith.minimumf %42, %45 : vector<256x140xf32>
    %47 = math.exp %46 : vector<256x140xf32>
    %cst_27 = arith.constant 1.000000e+00 : f32
    %48 = vector.broadcast %cst_27 : f32 to vector<256x140xf32>
    %49 = arith.subf %47, %48 : vector<256x140xf32>
    %cst_28 = arith.constant 1.67326319 : f32
    %50 = vector.broadcast %cst_28 : f32 to vector<256x140xf32>
    %51 = arith.mulf %50, %49 : vector<256x140xf32>
    %52 = arith.select %44, %42, %51 : vector<256x140xi1>, vector<256x140xf32>
    %cst_29 = arith.constant 1.05070102 : f32
    %53 = vector.broadcast %cst_29 : f32 to vector<256x140xf32>
    %54 = arith.mulf %53, %52 : vector<256x140xf32>
    %c0_30 = arith.constant 0 : index
    %c0_31 = arith.constant 0 : index
    %55 = vector.load %arg8[%c0_30, %c0_31] : memref<256x140xf32, #tpu.memory_space<vmem>>, vector<256x140xf32>
    tpu.vector_store %arg8[%c0_30, %c0_31], %54 {strides = array<i32>} : memref<256x140xf32, #tpu.memory_space<vmem>>, vector<256x140xf32>,
    return
  }
  func.func @transform_0(%arg0: i32) -> (i32, i32) {
    %c0_i32 = arith.constant 0 : i32
    %c0_i32_0 = arith.constant 0 : i32
    return %arg0, %c0_i32 : i32, i32
  }
  func.func @transform_1(%arg0: i32) -> (i32, i32) {
    %c0_i32 = arith.constant 0 : i32
    %c0_i32_0 = arith.constant 0 : i32
    %c0_i32_1 = arith.constant 0 : i32
    return %c0_i32, %c0_i32_0 : i32, i32
  }
  func.func @transform_2(%arg0: i32) -> (i32, i32) {
    %c0_i32 = arith.constant 0 : i32
    %c0_i32_0 = arith.constant 0 : i32
    %c0_i32_1 = arith.constant 0 : i32
    return %c0_i32, %c0_i32_0 : i32, i32
  }
  func.func @transform_3(%arg0: i32) -> (i32, i32) {
    %c0_i32 = arith.constant 0 : i32
    %c0_i32_0 = arith.constant 0 : i32
    %c0_i32_1 = arith.constant 0 : i32
    return %c0_i32, %c0_i32_0 : i32, i32
  }
  func.func @transform_4(%arg0: i32) -> (i32, i32) {
    %c0_i32 = arith.constant 0 : i32
    %c0_i32_0 = arith.constant 0 : i32
    %c0_i32_1 = arith.constant 0 : i32
    return %c0_i32, %c0_i32_0 : i32, i32
  }
  func.func @transform_5(%arg0: i32) -> (i32, i32) {
    %c0_i32 = arith.constant 0 : i32
    %c0_i32_0 = arith.constant 0 : i32
    %c0_i32_1 = arith.constant 0 : i32
    return %c0_i32, %c0_i32_0 : i32, i32
  }
  func.func @transform_6(%arg0: i32) -> (i32, i32) {
    %c0_i32 = arith.constant 0 : i32
    %c0_i32_0 = arith.constant 0 : i32
    %c0_i32_1 = arith.constant 0 : i32
    return %c0_i32, %c0_i32_0 : i32, i32
  }
  func.func @transform_7(%arg0: i32) -> (i32, i32) {
    %c0_i32 = arith.constant 0 : i32
    %c0_i32_0 = arith.constant 0 : i32
    return %arg0, %c0_i32 : i32, i32
  }
}

</mosaic_0001>

<llo_original>
// kernel: decoder_forward.1
$region0: #{decoder_forward.1}
  #allocation0 [shape = 'u32[]', space=smem, size = 0x4, offset = 0x4, fixed_abs, tag = 'smem constant byte address 0x4 - core index']
  #allocation1 [shape = 'u32[144,128]{1,0:T(1,128)}', space=vmem, size = 0x12000, scoped, tag = 'internal scratch']
  %s0 = inlined_call_operand.vmem [shape: f32[512,30], index: 0, kind: input, shape index: {}]
  %s1 = inlined_call_operand.vmem [shape: bf16[30,128], index: 1, kind: input, shape index: {}]
  %s2 = inlined_call_operand.vmem [shape: f32[1,128], index: 2, kind: input, shape index: {}]
  %s3 = inlined_call_operand.vmem [shape: bf16[128,128], index: 3, kind: input, shape index: {}]
  %s4 = inlined_call_operand.vmem [shape: f32[1,128], index: 4, kind: input, shape index: {}]
  %s5 = inlined_call_operand.vmem [shape: bf16[128,140], index: 5, kind: input, shape index: {}]
  %s6 = inlined_call_operand.vmem [shape: f32[1,140], index: 6, kind: input, shape index: {}]
  %s7 = inlined_call_operand.vmem [shape: f32[512,140], index: 7, kind: output, shape index: {}]
  %s8 = sld [smem:[#allocation0]]
  $region61: #{decoder_forward.1} parent=0
    _
  %s10 = ssub.s32 1, %s8
  %s11 = scalar_select 0, %s10, %s8
  loop: start=0, step=1, limit=4
  $region2: #{decoder_forward.1} parent=0 // loop_pre_header
    _
  $region3: #{decoder_forward.1} parent=0 // loop_header
    %s13 = sphi 0, %s17
    %p14 = scmp.ge.s32.totalorder %s13, 4
    %s23 = sphi 0, %s25
    %s26 = sphi 0, %s23
    %s27 = sphi 0, %s26
    %s43 = sphi 0, %s27
    %s47 = sphi 0, %s47
    %s49 = sphi 0, %s47
    %s50 = sphi 0, %s49
    %s64 = sphi 0, %s50
    %s68 = sphi 0, %s68
    %s70 = sphi 0, %s68
    %s71 = sphi 0, %s70
    %s85 = sphi 0, %s71
    %s89 = sphi 0, %s89
    %s91 = sphi 0, %s89
    %s92 = sphi 0, %s91
    %s106 = sphi 0, %s92
    %s110 = sphi 0, %s110
    %s112 = sphi 0, %s110
    %s113 = sphi 0, %s112
    %s127 = sphi 0, %s113
    %s131 = sphi 0, %s131
    %s133 = sphi 0, %s131
    %s134 = sphi 0, %s133
    %s148 = sphi 0, %s134
    %s152 = sphi 0, %s152
    %s154 = sphi 0, %s152
    %s155 = sphi 0, %s154
    %s169 = sphi 0, %s155
    %s175 = sphi 0, %s177
    %s178 = sphi 0, %s175
    %s179 = sphi 0, %s178
    %s195 = sphi 0, %s179
  $region4: #{decoder_forward.1} parent=0 // loop_header_branch
    %16 = sbr.rel (%p14) target = $region8
  $region5: #{decoder_forward.1} parent=0 // loop_body
    %s18 = ssub.s32 %s13, 1
    %s19 = ssub.s32 %s13, 2
    %s20 = sadd.s32 %s13, 1
    %s21 = ssub.s32 %s13, %s20
    %p22 = scmp.eq.s32.totalorder %s21, 0
    %s24 = sadd.s32 %s23, 1
    %s25 = scalar_select %p22, %s23, %s24
    %p28 = pneg %p22
    %p29 = scmp.eq.s32.totalorder %s13, 1
    %p30 = por %p28, %p29
    %p31 = scmp.ne.s32.totalorder %s23, %s26
    %p32 = scmp.eq.s32.totalorder %s13, 0
    %p33 = por %p31, %p32
    %p34 = scmp.ne.s32.totalorder %s23, %s26
    %p35 = scmp.eq.s32.totalorder %s18, 1
    %p36 = por %p34, %p35
    %p37 = scmp.ne.s32.totalorder %s26, %s27
    %p38 = scmp.eq.s32.totalorder %s18, 0
    %p39 = por %p37, %p38
    %p40 = scmp.ne.s32.totalorder %s26, %s27
    %p41 = scmp.eq.s32.totalorder %s19, 1
    %p42 = por %p40, %p41
    %p44 = scmp.ne.s32.totalorder %s27, %s43
    %p45 = scmp.eq.s32.totalorder %s19, 0
    %p46 = por %p44, %p45
    %s48 = sadd.s32 %s47, 1
    %p51 = scmp.eq.s32.totalorder %s13, 1
    %p52 = scmp.ne.s32.totalorder %s47, %s49
    %p53 = scmp.eq.s32.totalorder %s13, 0
    %p54 = por %p52, %p53
    %p55 = scmp.ne.s32.totalorder %s47, %s49
    %p56 = scmp.eq.s32.totalorder %s18, 1
    %p57 = por %p55, %p56
    %p58 = scmp.ne.s32.totalorder %s49, %s50
    %p59 = scmp.eq.s32.totalorder %s18, 0
    %p60 = por %p58, %p59
    %p61 = scmp.ne.s32.totalorder %s49, %s50
    %p62 = scmp.eq.s32.totalorder %s19, 1
    %p63 = por %p61, %p62
    %p65 = scmp.ne.s32.totalorder %s50, %s64
    %p66 = scmp.eq.s32.totalorder %s19, 0
    %p67 = por %p65, %p66
    %s69 = sadd.s32 %s68, 1
    %p72 = scmp.eq.s32.totalorder %s13, 1
    %p73 = scmp.ne.s32.totalorder %s68, %s70
    %p74 = scmp.eq.s32.totalorder %s13, 0
    %p75 = por %p73, %p74
    %p76 = scmp.ne.s32.totalorder %s68, %s70
    %p77 = scmp.eq.s32.totalorder %s18, 1
    %p78 = por %p76, %p77
    %p79 = scmp.ne.s32.totalorder %s70, %s71
    %p80 = scmp.eq.s32.totalorder %s18, 0
    %p81 = por %p79, %p80
    %p82 = scmp.ne.s32.totalorder %s70, %s71
    %p83 = scmp.eq.s32.totalorder %s19, 1
    %p84 = por %p82, %p83
    %p86 = scmp.ne.s32.totalorder %s71, %s85
    %p87 = scmp.eq.s32.totalorder %s19, 0
    %p88 = por %p86, %p87
    %s90 = sadd.s32 %s89, 1
    %p93 = scmp.eq.s32.totalorder %s13, 1
    %p94 = scmp.ne.s32.totalorder %s89, %s91
    %p95 = scmp.eq.s32.totalorder %s13, 0
    %p96 = por %p94, %p95
    %p97 = scmp.ne.s32.totalorder %s89, %s91
    %p98 = scmp.eq.s32.totalorder %s18, 1
    %p99 = por %p97, %p98
    %p100 = scmp.ne.s32.totalorder %s91, %s92
    %p101 = scmp.eq.s32.totalorder %s18, 0
    %p102 = por %p100, %p101
    %p103 = scmp.ne.s32.totalorder %s91, %s92
    %p104 = scmp.eq.s32.totalorder %s19, 1
    %p105 = por %p103, %p104
    %p107 = scmp.ne.s32.totalorder %s92, %s106
    %p108 = scmp.eq.s32.totalorder %s19, 0
    %p109 = por %p107, %p108
    %s111 = sadd.s32 %s110, 1
    %p114 = scmp.eq.s32.totalorder %s13, 1
    %p115 = scmp.ne.s32.totalorder %s110, %s112
    %p116 = scmp.eq.s32.totalorder %s13, 0
    %p117 = por %p115, %p116
    %p118 = scmp.ne.s32.totalorder %s110, %s112
    %p119 = scmp.eq.s32.totalorder %s18, 1
    %p120 = por %p118, %p119
    %p121 = scmp.ne.s32.totalorder %s112, %s113
    %p122 = scmp.eq.s32.totalorder %s18, 0
    %p123 = por %p121, %p122
    %p124 = scmp.ne.s32.totalorder %s112, %s113
    %p125 = scmp.eq.s32.totalorder %s19, 1
    %p126 = por %p124, %p125
    %p128 = scmp.ne.s32.totalorder %s113, %s127
    %p129 = scmp.eq.s32.totalorder %s19, 0
    %p130 = por %p128, %p129
    %s132 = sadd.s32 %s131, 1
    %p135 = scmp.eq.s32.totalorder %s13, 1
    %p136 = scmp.ne.s32.totalorder %s131, %s133
    %p137 = scmp.eq.s32.totalorder %s13, 0
    %p138 = por %p136, %p137
    %p139 = scmp.ne.s32.totalorder %s131, %s133
    %p140 = scmp.eq.s32.totalorder %s18, 1
    %p141 = por %p139, %p140
    %p142 = scmp.ne.s32.totalorder %s133, %s134
    %p143 = scmp.eq.s32.totalorder %s18, 0
    %p144 = por %p142, %p143
    %p145 = scmp.ne.s32.totalorder %s133, %s134
    %p146 = scmp.eq.s32.totalorder %s19, 1
    %p147 = por %p145, %p146
    %p149 = scmp.ne.s32.totalorder %s134, %s148
    %p150 = scmp.eq.s32.totalorder %s19, 0
    %p151 = por %p149, %p150
    %s153 = sadd.s32 %s152, 1
    %p156 = scmp.eq.s32.totalorder %s13, 1
    %p157 = scmp.ne.s32.totalorder %s152, %s154
    %p158 = scmp.eq.s32.totalorder %s13, 0
    %p159 = por %p157, %p158
    %p160 = scmp.ne.s32.totalorder %s152, %s154
    %p161 = scmp.eq.s32.totalorder %s18, 1
    %p162 = por %p160, %p161
    %p163 = scmp.ne.s32.totalorder %s154, %s155
    %p164 = scmp.eq.s32.totalorder %s18, 0
    %p165 = por %p163, %p164
    %p166 = scmp.ne.s32.totalorder %s154, %s155
    %p167 = scmp.eq.s32.totalorder %s19, 1
    %p168 = por %p166, %p167
    %p170 = scmp.ne.s32.totalorder %s155, %s169
    %p171 = scmp.eq.s32.totalorder %s19, 0
    %p172 = por %p170, %p171
    %s173 = ssub.s32 %s13, %s20
    %p174 = scmp.eq.s32.totalorder %s173, 0
    %s176 = sadd.s32 %s175, 1
    %s177 = scalar_select %p174, %s175, %s176
    %p180 = pneg %p174
    %p181 = scmp.eq.s32.totalorder %s13, 1
    %p182 = por %p180, %p181
    %p183 = scmp.ne.s32.totalorder %s175, %s178
    %p184 = scmp.eq.s32.totalorder %s13, 0
    %p185 = por %p183, %p184
    %p186 = scmp.ne.s32.totalorder %s175, %s178
    %p187 = scmp.eq.s32.totalorder %s18, 1
    %p188 = por %p186, %p187
    %p189 = scmp.ne.s32.totalorder %s178, %s179
    %p190 = scmp.eq.s32.totalorder %s18, 0
    %p191 = por %p189, %p190
    %p192 = scmp.ne.s32.totalorder %s178, %s179
    %p193 = scmp.eq.s32.totalorder %s19, 1
    %p194 = por %p192, %p193
    %p196 = scmp.ne.s32.totalorder %s179, %s195
    %p197 = scmp.eq.s32.totalorder %s19, 0
    %p198 = por %p196, %p197
    %p199 = scmp.le.s32.totalorder 1, %s13
    %p200 = scmp.lt.s32.totalorder %s13, 3
    %p201 = pnand %p199, %p200
    %p202 = pneg %p201
    // Predicated region
    $region9: #{decoder_forward.1} parent=5 // pred_check
      _
    $region10: #{decoder_forward.1} parent=5 // pred_check_branch
      %204 = sbr.rel (%p201) target = $region12
    $region11: #{decoder_forward.1} parent=5 // pred_region
      %s205 = ssub.s32 %s13, 1
      // Predicated region
      $region13: #{decoder_forward.1} parent=11 // pred_check
        %p206 = pneg %p60
      $region14: #{decoder_forward.1} parent=11 // pred_check_branch
        %208 = sbr.rel (%p206) target = $region16
      $region15: #{decoder_forward.1} parent=11 // pred_region
        _
      $region16: #{decoder_forward.1} parent=11 // pred_fallthru
        _
      // Predicated region
      $region17: #{decoder_forward.1} parent=11 // pred_check
        %p209 = pneg %p81
      $region18: #{decoder_forward.1} parent=11 // pred_check_branch
        %211 = sbr.rel (%p209) target = $region20
      $region19: #{decoder_forward.1} parent=11 // pred_region
        _
      $region20: #{decoder_forward.1} parent=11 // pred_fallthru
        _
      // Predicated region
      $region21: #{decoder_forward.1} parent=11 // pred_check
        %p212 = pneg %p102
      $region22: #{decoder_forward.1} parent=11 // pred_check_branch
        %214 = sbr.rel (%p212) target = $region24
      $region23: #{decoder_forward.1} parent=11 // pred_region
        _
      $region24: #{decoder_forward.1} parent=11 // pred_fallthru
        _
      // Predicated region
      $region25: #{decoder_forward.1} parent=11 // pred_check
        %p215 = pneg %p123
      $region26: #{decoder_forward.1} parent=11 // pred_check_branch
        %217 = sbr.rel (%p215) target = $region28
      $region27: #{decoder_forward.1} parent=11 // pred_region
        _
      $region28: #{decoder_forward.1} parent=11 // pred_fallthru
        _
      // Predicated region
      $region29: #{decoder_forward.1} parent=11 // pred_check
        %p218 = pneg %p144
      $region30: #{decoder_forward.1} parent=11 // pred_check_branch
        %220 = sbr.rel (%p218) target = $region32
      $region31: #{decoder_forward.1} parent=11 // pred_region
        _
      $region32: #{decoder_forward.1} parent=11 // pred_fallthru
        _
      // Predicated region
      $region33: #{decoder_forward.1} parent=11 // pred_check
        %p221 = pneg %p165
      $region34: #{decoder_forward.1} parent=11 // pred_check_branch
        %223 = sbr.rel (%p221) target = $region36
      $region35: #{decoder_forward.1} parent=11 // pred_region
        _
      $region36: #{decoder_forward.1} parent=11 // pred_fallthru
        _
    $region12: #{decoder_forward.1} parent=5 // pred_fallthru
      _
    %p224 = scmp.lt.s32.totalorder %s13, 2
    // Predicated region
    $region37: #{decoder_forward.1} parent=5 // pred_check
      %p225 = pneg %p224
    $region38: #{decoder_forward.1} parent=5 // pred_check_branch
      %227 = sbr.rel (%p225) target = $region40
    $region39: #{decoder_forward.1} parent=5 // pred_region
      // Predicated region
      $region41: #{decoder_forward.1} parent=39 // pred_check
        %p228 = pneg %p33
      $region42: #{decoder_forward.1} parent=39 // pred_check_branch
        %230 = sbr.rel (%p228) target = $region44
      $region43: #{decoder_forward.1} parent=39 // pred_region
        %s231 = smul.u32 32, %s13
        %p232 = scmp.lt.s32.totalorder %s231, 63
        %s233 = scalar_select %p232, %s231, 63
        %s234 = smul.addr %s233, 8
        %s235 = scalar_lea.vmem %s0, %s234
        %s236 = smul.u32 32, %s13
      $region44: #{decoder_forward.1} parent=39 // pred_fallthru
        _
    $region40: #{decoder_forward.1} parent=5 // pred_fallthru
      _
    %p237 = scmp.le.s32.totalorder 1, %s13
    %p238 = scmp.lt.s32.totalorder %s13, 3
    %p239 = pnand %p237, %p238
    %p240 = pneg %p239
    // Predicated region
    $region45: #{decoder_forward.1} parent=5 // pred_check
      _
    $region46: #{decoder_forward.1} parent=5 // pred_check_branch
      %242 = sbr.rel (%p239) target = $region48
    $region47: #{decoder_forward.1} parent=5 // pred_region
      %s243 = ssub.s32 %s13, 1
      %s244 = smul.u32 32, %s18
      %p245 = scmp.lt.s32.totalorder %s244, 63
      %s246 = scalar_select %p245, %s244, 63
      %s247 = smul.addr %s246, 8
      %s248 = scalar_lea.vmem %s0, %s247
      %p249 = pneg %p39
      %p250 = pneg %p36
      %p251 = pneg %p60
      %p252 = pneg %p57
      %p253 = pneg %p81
      %p254 = pneg %p78
      %p255 = pneg %p102
      %p256 = pneg %p99
      %p257 = pneg %p123
      %p258 = pneg %p120
      %p259 = pneg %p144
      %p260 = pneg %p141
      %p261 = pneg %p165
      %p262 = pneg %p162
      %p263 = pneg %p191
      %p264 = pneg %p188
      %s265 = smul.u32 32, %s18
      %p266 = scmp.lt.s32.totalorder %s265, 63
      %s267 = scalar_select %p266, %s265, 63
      %s268 = smul.addr %s267, 2
      %s269 = smul.addr %s268, 8
      %s270 = scalar_lea.vmem %s7, %s269
      %s271 = smul.u32 32, %s18
      %p272 = scmp.lt.s32.totalorder %s271, 63
      %s273 = scalar_select %p272, %s271, 63
      %s274 = smul.addr %s273, 8
      %s275 = scalar_lea.vmem %s0, %s274
      %s276 = smul.u32 32, %s18
      %s277 = smul.u32 32, %s18
      %p278 = scmp.lt.s32.totalorder %s277, 63
      %s279 = scalar_select %p278, %s277, 63
      %s280 = smul.addr %s279, 2
      %s281 = smul.addr %s280, 8
      %s282 = scalar_lea.vmem %s7, %s281
      %s283 = smul.u32 32, %s18
      %v285 = vld [vmem:[%s275] sm:$0xff]
      %v286 = vld [vmem:[%s275 + $0x8] sm:$0xff]
      %v287 = vld [vmem:[%s275 + $0x10] sm:$0xff]
      %v288 = vld [vmem:[%s275 + $0x18] sm:$0xff]
      %v289 = vld [vmem:[%s275 + $0x20] sm:$0xff]
      %v290 = vld [vmem:[%s275 + $0x28] sm:$0xff]
      %v291 = vld [vmem:[%s275 + $0x30] sm:$0xff]
      %v292 = vld [vmem:[%s275 + $0x38] sm:$0xff]
      %v293 = vld [vmem:[%s275 + $0x40] sm:$0xff]
      %v294 = vld [vmem:[%s275 + $0x48] sm:$0xff]
      %v295 = vld [vmem:[%s275 + $0x50] sm:$0xff]
      %v296 = vld [vmem:[%s275 + $0x58] sm:$0xff]
      %v297 = vld [vmem:[%s275 + $0x60] sm:$0xff]
      %v298 = vld [vmem:[%s275 + $0x68] sm:$0xff]
      %v299 = vld [vmem:[%s275 + $0x70] sm:$0xff]
      %v300 = vld [vmem:[%s275 + $0x78] sm:$0xff]
      %v301 = vld [vmem:[%s275 + $0x80] sm:$0xff]
      %v302 = vld [vmem:[%s275 + $0x88] sm:$0xff]
      %v303 = vld [vmem:[%s275 + $0x90] sm:$0xff]
      %v304 = vld [vmem:[%s275 + $0x98] sm:$0xff]
      %v305 = vld [vmem:[%s275 + $0xa0] sm:$0xff]
      %v306 = vld [vmem:[%s275 + $0xa8] sm:$0xff]
      %v307 = vld [vmem:[%s275 + $0xb0] sm:$0xff]
      %v308 = vld [vmem:[%s275 + $0xb8] sm:$0xff]
      %v309 = vld [vmem:[%s275 + $0xc0] sm:$0xff]
      %v310 = vld [vmem:[%s275 + $0xc8] sm:$0xff]
      %v311 = vld [vmem:[%s275 + $0xd0] sm:$0xff]
      %v312 = vld [vmem:[%s275 + $0xd8] sm:$0xff]
      %v313 = vld [vmem:[%s275 + $0xe0] sm:$0xff]
      %v314 = vld [vmem:[%s275 + $0xe8] sm:$0xff]
      %v315 = vld [vmem:[%s275 + $0xf0] sm:$0xff]
      %v316 = vld [vmem:[%s275 + $0xf8] sm:$0xff]
      %v317 = vpack.c.bf16 %v286, %v285
      %v318 = vpack.c.bf16 %v288, %v287
      %v319 = vpack.c.bf16 %v290, %v289
      %v320 = vpack.c.bf16 %v292, %v291
      %v321 = vpack.c.bf16 %v294, %v293
      %v322 = vpack.c.bf16 %v296, %v295
      %v323 = vpack.c.bf16 %v298, %v297
      %v324 = vpack.c.bf16 %v300, %v299
      %v325 = vpack.c.bf16 %v302, %v301
      %v326 = vpack.c.bf16 %v304, %v303
      %v327 = vpack.c.bf16 %v306, %v305
      %v328 = vpack.c.bf16 %v308, %v307
      %v329 = vpack.c.bf16 %v310, %v309
      %v330 = vpack.c.bf16 %v312, %v311
      %v331 = vpack.c.bf16 %v314, %v313
      %v332 = vpack.c.bf16 %v316, %v315
      %v333 = vld [vmem:[%s1] sm:$0xf]
      %v334 = vld [vmem:[%s1 + $0x4] sm:$0xf]
      %v335 = vld [vmem:[%s1 + $0x8] sm:$0xf]
      %v336 = vld [vmem:[%s1 + $0xc] sm:$0x7]
      %v337 = vld [vmem:[%s2] sm:$0x1]
      %v339 = vlaneseq
      %v340 = vshrl.u32 %v339, 7
      %v341 = vsub.s32 0, %v340
      %v342 = vrot.slane %v337, %v341
      %v348 = vunpack.c.l.b16 %v333
      %v349 = vunpack.c.l.b16 %v334
      %v350 = vunpack.c.l.b16 %v335
      %v351 = vunpack.c.l.b16 %v336
      %v352 = vpack.c.b16 %v349, %v348
      %v353 = vpack.c.b16 %v351, %v350
      %vm355 = vcmask 244736
      %v357 = vsel %vm355, %v317, 0
      %v360 = vsel %vm355, %v318, 0
      %v363 = vsel %vm355, %v319, 0
      %v366 = vsel %vm355, %v320, 0
      %v369 = vsel %vm355, %v321, 0
      %v372 = vsel %vm355, %v322, 0
      %v375 = vsel %vm355, %v323, 0
      %v378 = vsel %vm355, %v324, 0
      %v381 = vsel %vm355, %v325, 0
      %v384 = vsel %vm355, %v326, 0
      %v387 = vsel %vm355, %v327, 0
      %v390 = vsel %vm355, %v328, 0
      %v393 = vsel %vm355, %v329, 0
      %v396 = vsel %vm355, %v330, 0
      %v399 = vsel %vm355, %v331, 0
      %v402 = vsel %vm355, %v332, 0
      %vm404 = vcmask 1046528
      %v406 = vsel %vm404, %v353, 0
      %408 = vmatprep.subr.bf16.mxu0 0
      %409 = vmatpush1.bf16.msra.mxu0 0
      %410 = vmatprep.subr.bf16.mxu0 0
      %411 = vmatpush1.bf16.msra.mxu0 0
      %412 = vmatprep.subr.bf16.mxu0 0
      %413 = vmatpush1.bf16.msra.mxu0 0
      %414 = vmatprep.subr.bf16.mxu0 0
      %415 = vmatpush1.bf16.msra.mxu0 0
      %416 = vmatprep.subr.bf16.mxu0 0
      %417 = vmatpush1.bf16.msra.mxu0 0
      %418 = vmatprep.subr.bf16.mxu0 0
      %419 = vmatpush1.bf16.msra.mxu0 0
      %420 = vmatprep.subr.bf16.mxu0 0
      %421 = vmatpush1.bf16.msra.mxu0 %v406
      %422 = vmatprep.subr.bf16.mxu0 0
      %423 = vmatpush1.bf16.msra.mxu0 %v352
      %424 = vmatprep.subr.bf16.mxu0 0
      %425 = vmatpush2.bf16.msra.mxu0 0
      %426 = vmatprep.subr.bf16.mxu0 0
      %427 = vmatpush2.bf16.msra.mxu0 0
      %428 = vmatprep.subr.bf16.mxu0 0
      %429 = vmatpush2.bf16.msra.mxu0 0
      %430 = vmatprep.subr.bf16.mxu0 0
      %431 = vmatpush2.bf16.msra.mxu0 0
      %432 = vmatprep.subr.bf16.mxu0 0
      %433 = vmatpush2.bf16.msra.mxu0 0
      %434 = vmatprep.subr.bf16.mxu0 0
      %435 = vmatpush2.bf16.msra.mxu0 0
      %436 = vmatprep.subr.bf16.mxu0 0
      %437 = vmatpush2.bf16.msra.mxu0 0
      %438 = vmatprep.subr.bf16.mxu0 0
      %439 = vmatpush2.bf16.msra.mxu0 0
      %440 = vmatprep.mubr.bf16.mxu0 0
      %441 = vmatmul.mubr.bf16.gmra.mxu0 %v357
      %v442 = vpop.f32.mrf.mxu0
      %v443 = vadd.f32 %v342, %v442
      %v444 = vpop.f32.mrf.mxu0
      %v445 = vpop.f32.mrf.mxu0
      %v446 = vadd.f32 %v342, %v445
      %v447 = vpop.f32.mrf.mxu0
      %448 = vmatprep.mubr.bf16.mxu0 0
      %449 = vmatmul.mubr.bf16.gmra.mxu0 %v360
      %v450 = vpop.f32.mrf.mxu0
      %v451 = vadd.f32 %v342, %v450
      %v452 = vpop.f32.mrf.mxu0
      %v453 = vpop.f32.mrf.mxu0
      %v454 = vadd.f32 %v342, %v453
      %v455 = vpop.f32.mrf.mxu0
      %456 = vmatprep.mubr.bf16.mxu0 0
      %457 = vmatmul.mubr.bf16.gmra.mxu0 %v363
      %v458 = vpop.f32.mrf.mxu0
      %v459 = vadd.f32 %v342, %v458
      %v460 = vpop.f32.mrf.mxu0
      %v461 = vpop.f32.mrf.mxu0
      %v462 = vadd.f32 %v342, %v461
      %v463 = vpop.f32.mrf.mxu0
      %464 = vmatprep.mubr.bf16.mxu0 0
      %465 = vmatmul.mubr.bf16.gmra.mxu0 %v366
      %v466 = vpop.f32.mrf.mxu0
      %v467 = vadd.f32 %v342, %v466
      %v468 = vpop.f32.mrf.mxu0
      %v469 = vpop.f32.mrf.mxu0
      %v470 = vadd.f32 %v342, %v469
      %v471 = vpop.f32.mrf.mxu0
      %472 = vmatprep.mubr.bf16.mxu0 0
      %473 = vmatmul.mubr.bf16.gmra.mxu0 %v369
      %v474 = vpop.f32.mrf.mxu0
      %v475 = vadd.f32 %v342, %v474
      %v476 = vpop.f32.mrf.mxu0
      %v477 = vpop.f32.mrf.mxu0
      %v478 = vadd.f32 %v342, %v477
      %v479 = vpop.f32.mrf.mxu0
      %480 = vmatprep.mubr.bf16.mxu0 0
      %481 = vmatmul.mubr.bf16.gmra.mxu0 %v372
      %v482 = vpop.f32.mrf.mxu0
      %v483 = vadd.f32 %v342, %v482
      %v484 = vpop.f32.mrf.mxu0
      %v485 = vpop.f32.mrf.mxu0
      %v486 = vadd.f32 %v342, %v485
      %v487 = vpop.f32.mrf.mxu0
      %488 = vmatprep.mubr.bf16.mxu0 0
      %489 = vmatmul.mubr.bf16.gmra.mxu0 %v375
      %v490 = vpop.f32.mrf.mxu0
      %v491 = vadd.f32 %v342, %v490
      %v492 = vpop.f32.mrf.mxu0
      %v493 = vpop.f32.mrf.mxu0
      %v494 = vadd.f32 %v342, %v493
      %v495 = vpop.f32.mrf.mxu0
      %496 = vmatprep.mubr.bf16.mxu0 0
      %497 = vmatmul.mubr.bf16.gmra.mxu0 %v378
      %v498 = vpop.f32.mrf.mxu0
      %v499 = vadd.f32 %v342, %v498
      %v500 = vpop.f32.mrf.mxu0
      %v501 = vpop.f32.mrf.mxu0
      %v502 = vadd.f32 %v342, %v501
      %v503 = vpop.f32.mrf.mxu0
      %504 = vmatprep.mubr.bf16.mxu0 0
      %505 = vmatmul.mubr.bf16.gmra.mxu0 %v381
      %v506 = vpop.f32.mrf.mxu0
      %v507 = vadd.f32 %v342, %v506
      %v508 = vpop.f32.mrf.mxu0
      %v509 = vpop.f32.mrf.mxu0
      %v510 = vadd.f32 %v342, %v509
      %v511 = vpop.f32.mrf.mxu0
      %512 = vmatprep.mubr.bf16.mxu0 0
      %513 = vmatmul.mubr.bf16.gmra.mxu0 %v384
      %v514 = vpop.f32.mrf.mxu0
      %v515 = vadd.f32 %v342, %v514
      %v516 = vpop.f32.mrf.mxu0
      %v517 = vpop.f32.mrf.mxu0
      %v518 = vadd.f32 %v342, %v517
      %v519 = vpop.f32.mrf.mxu0
      %520 = vmatprep.mubr.bf16.mxu0 0
      %521 = vmatmul.mubr.bf16.gmra.mxu0 %v387
      %v522 = vpop.f32.mrf.mxu0
      %v523 = vadd.f32 %v342, %v522
      %v524 = vpop.f32.mrf.mxu0
      %v525 = vpop.f32.mrf.mxu0
      %v526 = vadd.f32 %v342, %v525
      %v527 = vpop.f32.mrf.mxu0
      %528 = vmatprep.mubr.bf16.mxu0 0
      %529 = vmatmul.mubr.bf16.gmra.mxu0 %v390
      %v530 = vpop.f32.mrf.mxu0
      %v531 = vadd.f32 %v342, %v530
      %v532 = vpop.f32.mrf.mxu0
      %v533 = vpop.f32.mrf.mxu0
      %v534 = vadd.f32 %v342, %v533
      %v535 = vpop.f32.mrf.mxu0
      %536 = vmatprep.mubr.bf16.mxu0 0
      %537 = vmatmul.mubr.bf16.gmra.mxu0 %v393
      %v538 = vpop.f32.mrf.mxu0
      %v539 = vadd.f32 %v342, %v538
      %v540 = vpop.f32.mrf.mxu0
      %v541 = vpop.f32.mrf.mxu0
      %v542 = vadd.f32 %v342, %v541
      %v543 = vpop.f32.mrf.mxu0
      %544 = vmatprep.mubr.bf16.mxu0 0
      %545 = vmatmul.mubr.bf16.gmra.mxu0 %v396
      %v546 = vpop.f32.mrf.mxu0
      %v547 = vadd.f32 %v342, %v546
      %v548 = vpop.f32.mrf.mxu0
      %v549 = vpop.f32.mrf.mxu0
      %v550 = vadd.f32 %v342, %v549
      %v551 = vpop.f32.mrf.mxu0
      %552 = vmatprep.mubr.bf16.mxu0 0
      %553 = vmatmul.mubr.bf16.gmra.mxu0 %v399
      %v554 = vpop.f32.mrf.mxu0
      %v555 = vadd.f32 %v342, %v554
      %v556 = vpop.f32.mrf.mxu0
      %v557 = vpop.f32.mrf.mxu0
      %v558 = vadd.f32 %v342, %v557
      %v559 = vpop.f32.mrf.mxu0
      %560 = vmatprep.mubr.bf16.mxu0 0
      %561 = vmatmul.mubr.bf16.gmra.mxu0 %v402
      %v562 = vpop.f32.mrf.mxu0
      %v563 = vadd.f32 %v342, %v562
      %v564 = vpop.f32.mrf.mxu0
      %v565 = vpop.f32.mrf.mxu0
      %v566 = vadd.f32 %v342, %v565
      %v567 = vpop.f32.mrf.mxu0
      %568 = vdwg.mxu0
      %vm569 = vcmp.gt.f32.partialorder %v443, 0.0
      %vm570 = vcmp.gt.f32.partialorder %v446, 0.0
      %vm571 = vcmp.gt.f32.partialorder %v451, 0.0
      %vm572 = vcmp.gt.f32.partialorder %v454, 0.0
      %vm573 = vcmp.gt.f32.partialorder %v459, 0.0
      %vm574 = vcmp.gt.f32.partialorder %v462, 0.0
      %vm575 = vcmp.gt.f32.partialorder %v467, 0.0
      %vm576 = vcmp.gt.f32.partialorder %v470, 0.0
      %vm577 = vcmp.gt.f32.partialorder %v475, 0.0
      %vm578 = vcmp.gt.f32.partialorder %v478, 0.0
      %vm579 = vcmp.gt.f32.partialorder %v483, 0.0
      %vm580 = vcmp.gt.f32.partialorder %v486, 0.0
      %vm581 = vcmp.gt.f32.partialorder %v491, 0.0
      %vm582 = vcmp.gt.f32.partialorder %v494, 0.0
      %vm583 = vcmp.gt.f32.partialorder %v499, 0.0
      %vm584 = vcmp.gt.f32.partialorder %v502, 0.0
      %vm585 = vcmp.gt.f32.partialorder %v507, 0.0
      %vm586 = vcmp.gt.f32.partialorder %v510, 0.0
      %vm587 = vcmp.gt.f32.partialorder %v515, 0.0
      %vm588 = vcmp.gt.f32.partialorder %v518, 0.0
      %vm589 = vcmp.gt.f32.partialorder %v523, 0.0
      %vm590 = vcmp.gt.f32.partialorder %v526, 0.0
      %vm591 = vcmp.gt.f32.partialorder %v531, 0.0
      %vm592 = vcmp.gt.f32.partialorder %v534, 0.0
      %vm593 = vcmp.gt.f32.partialorder %v539, 0.0
      %vm594 = vcmp.gt.f32.partialorder %v542, 0.0
      %vm595 = vcmp.gt.f32.partialorder %v547, 0.0
      %vm596 = vcmp.gt.f32.partialorder %v550, 0.0
      %vm597 = vcmp.gt.f32.partialorder %v555, 0.0
      %vm598 = vcmp.gt.f32.partialorder %v558, 0.0
      %vm599 = vcmp.gt.f32.partialorder %v563, 0.0
      %vm600 = vcmp.gt.f32.partialorder %v566, 0.0
      %v601 = vmin.f32 %v443, 0.0
      %v602 = vmin.f32 %v446, 0.0
      %v603 = vmin.f32 %v451, 0.0
      %v604 = vmin.f32 %v454, 0.0
      %v605 = vmin.f32 %v459, 0.0
      %v606 = vmin.f32 %v462, 0.0
      %v607 = vmin.f32 %v467, 0.0
      %v608 = vmin.f32 %v470, 0.0
      %v609 = vmin.f32 %v475, 0.0
      %v610 = vmin.f32 %v478, 0.0
      %v611 = vmin.f32 %v483, 0.0
      %v612 = vmin.f32 %v486, 0.0
      %v613 = vmin.f32 %v491, 0.0
      %v614 = vmin.f32 %v494, 0.0
      %v615 = vmin.f32 %v499, 0.0
      %v616 = vmin.f32 %v502, 0.0
      %v617 = vmin.f32 %v507, 0.0
      %v618 = vmin.f32 %v510, 0.0
      %v619 = vmin.f32 %v515, 0.0
      %v620 = vmin.f32 %v518, 0.0
      %v621 = vmin.f32 %v523, 0.0
      %v622 = vmin.f32 %v526, 0.0
      %v623 = vmin.f32 %v531, 0.0
      %v624 = vmin.f32 %v534, 0.0
      %v625 = vmin.f32 %v539, 0.0
      %v626 = vmin.f32 %v542, 0.0
      %v627 = vmin.f32 %v547, 0.0
      %v628 = vmin.f32 %v550, 0.0
      %v629 = vmin.f32 %v555, 0.0
      %v630 = vmin.f32 %v558, 0.0
      %v631 = vmin.f32 %v563, 0.0
      %v632 = vmin.f32 %v566, 0.0
      %v633 = vmul.f32 %v601, 1.442695
      %v634 = vpow.pop %v633
      %v635 = vmul.f32 %v602, 1.442695
      %v636 = vpow.pop %v635
      %v637 = vmul.f32 %v603, 1.442695
      %v638 = vpow.pop %v637
      %v639 = vmul.f32 %v604, 1.442695
      %v640 = vpow.pop %v639
      %v641 = vmul.f32 %v605, 1.442695
      %v642 = vpow.pop %v641
      %v643 = vmul.f32 %v606, 1.442695
      %v644 = vpow.pop %v643
      %v645 = vmul.f32 %v607, 1.442695
      %v646 = vpow.pop %v645
      %v647 = vmul.f32 %v608, 1.442695
      %v648 = vpow.pop %v647
      %v649 = vmul.f32 %v609, 1.442695
      %v650 = vpow.pop %v649
      %v651 = vmul.f32 %v610, 1.442695
      %v652 = vpow.pop %v651
      %v653 = vmul.f32 %v611, 1.442695
      %v654 = vpow.pop %v653
      %v655 = vmul.f32 %v612, 1.442695
      %v656 = vpow.pop %v655
      %v657 = vmul.f32 %v613, 1.442695
      %v658 = vpow.pop %v657
      %v659 = vmul.f32 %v614, 1.442695
      %v660 = vpow.pop %v659
      %v661 = vmul.f32 %v615, 1.442695
      %v662 = vpow.pop %v661
      %v663 = vmul.f32 %v616, 1.442695
      %v664 = vpow.pop %v663
      %v665 = vmul.f32 %v617, 1.442695
      %v666 = vpow.pop %v665
      %v667 = vmul.f32 %v618, 1.442695
      %v668 = vpow.pop %v667
      %v669 = vmul.f32 %v619, 1.442695
      %v670 = vpow.pop %v669
      %v671 = vmul.f32 %v620, 1.442695
      %v672 = vpow.pop %v671
      %v673 = vmul.f32 %v621, 1.442695
      %v674 = vpow.pop %v673
      %v675 = vmul.f32 %v622, 1.442695
      %v676 = vpow.pop %v675
      %v677 = vmul.f32 %v623, 1.442695
      %v678 = vpow.pop %v677
      %v679 = vmul.f32 %v624, 1.442695
      %v680 = vpow.pop %v679
      %v681 = vmul.f32 %v625, 1.442695
      %v682 = vpow.pop %v681
      %v683 = vmul.f32 %v626, 1.442695
      %v684 = vpow.pop %v683
      %v685 = vmul.f32 %v627, 1.442695
      %v686 = vpow.pop %v685
      %v687 = vmul.f32 %v628, 1.442695
      %v688 = vpow.pop %v687
      %v689 = vmul.f32 %v629, 1.442695
      %v690 = vpow.pop %v689
      %v691 = vmul.f32 %v630, 1.442695
      %v692 = vpow.pop %v691
      %v693 = vmul.f32 %v631, 1.442695
      %v694 = vpow.pop %v693
      %v695 = vmul.f32 %v632, 1.442695
      %v696 = vpow.pop %v695
      %v697 = vsub.f32 %v634, 1.0
      %v698 = vsub.f32 %v636, 1.0
      %v699 = vsub.f32 %v638, 1.0
      %v700 = vsub.f32 %v640, 1.0
      %v701 = vsub.f32 %v642, 1.0
      %v702 = vsub.f32 %v644, 1.0
      %v703 = vsub.f32 %v646, 1.0
      %v704 = vsub.f32 %v648, 1.0
      %v705 = vsub.f32 %v650, 1.0
      %v706 = vsub.f32 %v652, 1.0
      %v707 = vsub.f32 %v654, 1.0
      %v708 = vsub.f32 %v656, 1.0
      %v709 = vsub.f32 %v658, 1.0
      %v710 = vsub.f32 %v660, 1.0
      %v711 = vsub.f32 %v662, 1.0
      %v712 = vsub.f32 %v664, 1.0
      %v713 = vsub.f32 %v666, 1.0
      %v714 = vsub.f32 %v668, 1.0
      %v715 = vsub.f32 %v670, 1.0
      %v716 = vsub.f32 %v672, 1.0
      %v717 = vsub.f32 %v674, 1.0
      %v718 = vsub.f32 %v676, 1.0
      %v719 = vsub.f32 %v678, 1.0
      %v720 = vsub.f32 %v680, 1.0
      %v721 = vsub.f32 %v682, 1.0
      %v722 = vsub.f32 %v684, 1.0
      %v723 = vsub.f32 %v686, 1.0
      %v724 = vsub.f32 %v688, 1.0
      %v725 = vsub.f32 %v690, 1.0
      %v726 = vsub.f32 %v692, 1.0
      %v727 = vsub.f32 %v694, 1.0
      %v728 = vsub.f32 %v696, 1.0
      %v729 = vmul.f32 %v697, 1.6732632
      %v730 = vmul.f32 %v698, 1.6732632
      %v731 = vmul.f32 %v699, 1.6732632
      %v732 = vmul.f32 %v700, 1.6732632
      %v733 = vmul.f32 %v701, 1.6732632
      %v734 = vmul.f32 %v702, 1.6732632
      %v735 = vmul.f32 %v703, 1.6732632
      %v736 = vmul.f32 %v704, 1.6732632
      %v737 = vmul.f32 %v705, 1.6732632
      %v738 = vmul.f32 %v706, 1.6732632
      %v739 = vmul.f32 %v707, 1.6732632
      %v740 = vmul.f32 %v708, 1.6732632
      %v741 = vmul.f32 %v709, 1.6732632
      %v742 = vmul.f32 %v710, 1.6732632
      %v743 = vmul.f32 %v711, 1.6732632
      %v744 = vmul.f32 %v712, 1.6732632
      %v745 = vmul.f32 %v713, 1.6732632
      %v746 = vmul.f32 %v714, 1.6732632
      %v747 = vmul.f32 %v715, 1.6732632
      %v748 = vmul.f32 %v716, 1.6732632
      %v749 = vmul.f32 %v717, 1.6732632
      %v750 = vmul.f32 %v718, 1.6732632
      %v751 = vmul.f32 %v719, 1.6732632
      %v752 = vmul.f32 %v720, 1.6732632
      %v753 = vmul.f32 %v721, 1.6732632
      %v754 = vmul.f32 %v722, 1.6732632
      %v755 = vmul.f32 %v723, 1.6732632
      %v756 = vmul.f32 %v724, 1.6732632
      %v757 = vmul.f32 %v725, 1.6732632
      %v758 = vmul.f32 %v726, 1.6732632
      %v759 = vmul.f32 %v727, 1.6732632
      %v760 = vmul.f32 %v728, 1.6732632
      %v761 = vsel %vm569, %v443, %v729
      %v762 = vsel %vm570, %v446, %v730
      %v763 = vsel %vm571, %v451, %v731
      %v764 = vsel %vm572, %v454, %v732
      %v765 = vsel %vm573, %v459, %v733
      %v766 = vsel %vm574, %v462, %v734
      %v767 = vsel %vm575, %v467, %v735
      %v768 = vsel %vm576, %v470, %v736
      %v769 = vsel %vm577, %v475, %v737
      %v770 = vsel %vm578, %v478, %v738
      %v771 = vsel %vm579, %v483, %v739
      %v772 = vsel %vm580, %v486, %v740
      %v773 = vsel %vm581, %v491, %v741
      %v774 = vsel %vm582, %v494, %v742
      %v775 = vsel %vm583, %v499, %v743
      %v776 = vsel %vm584, %v502, %v744
      %v777 = vsel %vm585, %v507, %v745
      %v778 = vsel %vm586, %v510, %v746
      %v779 = vsel %vm587, %v515, %v747
      %v780 = vsel %vm588, %v518, %v748
      %v781 = vsel %vm589, %v523, %v749
      %v782 = vsel %vm590, %v526, %v750
      %v783 = vsel %vm591, %v531, %v751
      %v784 = vsel %vm592, %v534, %v752
      %v785 = vsel %vm593, %v539, %v753
      %v786 = vsel %vm594, %v542, %v754
      %v787 = vsel %vm595, %v547, %v755
      %v788 = vsel %vm596, %v550, %v756
      %v789 = vsel %vm597, %v555, %v757
      %v790 = vsel %vm598, %v558, %v758
      %v791 = vsel %vm599, %v563, %v759
      %v792 = vsel %vm600, %v566, %v760
      %v793 = vmul.f32 %v761, 1.050701
      %v794 = vmul.f32 %v762, 1.050701
      %v795 = vmul.f32 %v763, 1.050701
      %v796 = vmul.f32 %v764, 1.050701
      %v797 = vmul.f32 %v765, 1.050701
      %v798 = vmul.f32 %v766, 1.050701
      %v799 = vmul.f32 %v767, 1.050701
      %v800 = vmul.f32 %v768, 1.050701
      %v801 = vmul.f32 %v769, 1.050701
      %v802 = vmul.f32 %v770, 1.050701
      %v803 = vmul.f32 %v771, 1.050701
      %v804 = vmul.f32 %v772, 1.050701
      %v805 = vmul.f32 %v773, 1.050701
      %v806 = vmul.f32 %v774, 1.050701
      %v807 = vmul.f32 %v775, 1.050701
      %v808 = vmul.f32 %v776, 1.050701
      %v809 = vmul.f32 %v777, 1.050701
      %v810 = vmul.f32 %v778, 1.050701
      %v811 = vmul.f32 %v779, 1.050701
      %v812 = vmul.f32 %v780, 1.050701
      %v813 = vmul.f32 %v781, 1.050701
      %v814 = vmul.f32 %v782, 1.050701
      %v815 = vmul.f32 %v783, 1.050701
      %v816 = vmul.f32 %v784, 1.050701
      %v817 = vmul.f32 %v785, 1.050701
      %v818 = vmul.f32 %v786, 1.050701
      %v819 = vmul.f32 %v787, 1.050701
      %v820 = vmul.f32 %v788, 1.050701
      %v821 = vmul.f32 %v789, 1.050701
      %v822 = vmul.f32 %v790, 1.050701
      %v823 = vmul.f32 %v791, 1.050701
      %v824 = vmul.f32 %v792, 1.050701
      %v825 = vpack.c.bf16 %v794, %v793
      %v826 = vpack.c.bf16 %v796, %v795
      %v827 = vpack.c.bf16 %v798, %v797
      %v828 = vpack.c.bf16 %v800, %v799
      %v829 = vpack.c.bf16 %v802, %v801
      %v830 = vpack.c.bf16 %v804, %v803
      %v831 = vpack.c.bf16 %v806, %v805
      %v832 = vpack.c.bf16 %v808, %v807
      %v833 = vpack.c.bf16 %v810, %v809
      %v834 = vpack.c.bf16 %v812, %v811
      %v835 = vpack.c.bf16 %v814, %v813
      %v836 = vpack.c.bf16 %v816, %v815
      %v837 = vpack.c.bf16 %v818, %v817
      %v838 = vpack.c.bf16 %v820, %v819
      %v839 = vpack.c.bf16 %v822, %v821
      %v840 = vpack.c.bf16 %v824, %v823
      %v841 = vld [vmem:[%s3] sm:$0xf]
      %v842 = vld [vmem:[%s3 + $0x4] sm:$0xf]
      %v843 = vld [vmem:[%s3 + $0x8] sm:$0xf]
      %v844 = vld [vmem:[%s3 + $0xc] sm:$0xf]
      %v845 = vld [vmem:[%s3 + $0x10] sm:$0xf]
      %v846 = vld [vmem:[%s3 + $0x14] sm:$0xf]
      %v847 = vld [vmem:[%s3 + $0x18] sm:$0xf]
      %v848 = vld [vmem:[%s3 + $0x1c] sm:$0xf]
      %v849 = vld [vmem:[%s3 + $0x20] sm:$0xf]
      %v850 = vld [vmem:[%s3 + $0x24] sm:$0xf]
      %v851 = vld [vmem:[%s3 + $0x28] sm:$0xf]
      %v852 = vld [vmem:[%s3 + $0x2c] sm:$0xf]
      %v853 = vld [vmem:[%s3 + $0x30] sm:$0xf]
      %v854 = vld [vmem:[%s3 + $0x34] sm:$0xf]
      %v855 = vld [vmem:[%s3 + $0x38] sm:$0xf]
      %v856 = vld [vmem:[%s3 + $0x3c] sm:$0xf]
      %v857 = vld [vmem:[%s4] sm:$0x1]
      %v859 = vlaneseq
      %v860 = vshrl.u32 %v859, 7
      %v861 = vsub.s32 0, %v860
      %v862 = vrot.slane %v857, %v861
      %v880 = vunpack.c.l.b16 %v841
      %v881 = vunpack.c.l.b16 %v842
      %v882 = vunpack.c.l.b16 %v843
      %v883 = vunpack.c.l.b16 %v844
      %v884 = vunpack.c.l.b16 %v845
      %v885 = vunpack.c.l.b16 %v846
      %v886 = vunpack.c.l.b16 %v847
      %v887 = vunpack.c.l.b16 %v848
      %v888 = vunpack.c.l.b16 %v849
      %v889 = vunpack.c.l.b16 %v850
      %v890 = vunpack.c.l.b16 %v851
      %v891 = vunpack.c.l.b16 %v852
      %v892 = vunpack.c.l.b16 %v853
      %v893 = vunpack.c.l.b16 %v854
      %v894 = vunpack.c.l.b16 %v855
      %v895 = vunpack.c.l.b16 %v856
      %v896 = vpack.c.b16 %v881, %v880
      %v897 = vpack.c.b16 %v883, %v882
      %v898 = vpack.c.b16 %v885, %v884
      %v899 = vpack.c.b16 %v887, %v886
      %v900 = vpack.c.b16 %v889, %v888
      %v901 = vpack.c.b16 %v891, %v890
      %v902 = vpack.c.b16 %v893, %v892
      %v903 = vpack.c.b16 %v895, %v894
      %912 = vmatprep.subr.bf16.mxu0 0
      %913 = vmatpush1.bf16.msra.mxu0 %v903
      %914 = vmatprep.subr.bf16.mxu0 0
      %915 = vmatpush1.bf16.msra.mxu0 %v902
      %916 = vmatprep.subr.bf16.mxu0 0
      %917 = vmatpush1.bf16.msra.mxu0 %v901
      %918 = vmatprep.subr.bf16.mxu0 0
      %919 = vmatpush1.bf16.msra.mxu0 %v900
      %920 = vmatprep.subr.bf16.mxu0 0
      %921 = vmatpush1.bf16.msra.mxu0 %v899
      %922 = vmatprep.subr.bf16.mxu0 0
      %923 = vmatpush1.bf16.msra.mxu0 %v898
      %924 = vmatprep.subr.bf16.mxu0 0
      %925 = vmatpush1.bf16.msra.mxu0 %v897
      %926 = vmatprep.subr.bf16.mxu0 0
      %927 = vmatpush1.bf16.msra.mxu0 %v896
      %928 = vmatprep.subr.bf16.mxu0 0
      %929 = vmatpush2.bf16.msra.mxu0 0
      %930 = vmatprep.subr.bf16.mxu0 0
      %931 = vmatpush2.bf16.msra.mxu0 0
      %932 = vmatprep.subr.bf16.mxu0 0
      %933 = vmatpush2.bf16.msra.mxu0 0
      %934 = vmatprep.subr.bf16.mxu0 0
      %935 = vmatpush2.bf16.msra.mxu0 0
      %936 = vmatprep.subr.bf16.mxu0 0
      %937 = vmatpush2.bf16.msra.mxu0 0
      %938 = vmatprep.subr.bf16.mxu0 0
      %939 = vmatpush2.bf16.msra.mxu0 0
      %940 = vmatprep.subr.bf16.mxu0 0
      %941 = vmatpush2.bf16.msra.mxu0 0
      %942 = vmatprep.subr.bf16.mxu0 0
      %943 = vmatpush2.bf16.msra.mxu0 0
      %944 = vmatprep.mubr.bf16.mxu0 0
      %945 = vmatmul.mubr.bf16.gmra.mxu0 %v825
      %v946 = vpop.f32.mrf.mxu0
      %v947 = vadd.f32 %v862, %v946
      %v948 = vpop.f32.mrf.mxu0
      %v949 = vpop.f32.mrf.mxu0
      %v950 = vadd.f32 %v862, %v949
      %v951 = vpop.f32.mrf.mxu0
      %952 = vmatprep.mubr.bf16.mxu0 0
      %953 = vmatmul.mubr.bf16.gmra.mxu0 %v826
      %v954 = vpop.f32.mrf.mxu0
      %v955 = vadd.f32 %v862, %v954
      %v956 = vpop.f32.mrf.mxu0
      %v957 = vpop.f32.mrf.mxu0
      %v958 = vadd.f32 %v862, %v957
      %v959 = vpop.f32.mrf.mxu0
      %960 = vmatprep.mubr.bf16.mxu0 0
      %961 = vmatmul.mubr.bf16.gmra.mxu0 %v827
      %v962 = vpop.f32.mrf.mxu0
      %v963 = vadd.f32 %v862, %v962
      %v964 = vpop.f32.mrf.mxu0
      %v965 = vpop.f32.mrf.mxu0
      %v966 = vadd.f32 %v862, %v965
      %v967 = vpop.f32.mrf.mxu0
      %968 = vmatprep.mubr.bf16.mxu0 0
      %969 = vmatmul.mubr.bf16.gmra.mxu0 %v828
      %v970 = vpop.f32.mrf.mxu0
      %v971 = vadd.f32 %v862, %v970
      %v972 = vpop.f32.mrf.mxu0
      %v973 = vpop.f32.mrf.mxu0
      %v974 = vadd.f32 %v862, %v973
      %v975 = vpop.f32.mrf.mxu0
      %976 = vmatprep.mubr.bf16.mxu0 0
      %977 = vmatmul.mubr.bf16.gmra.mxu0 %v829
      %v978 = vpop.f32.mrf.mxu0
      %v979 = vadd.f32 %v862, %v978
      %v980 = vpop.f32.mrf.mxu0
      %v981 = vpop.f32.mrf.mxu0
      %v982 = vadd.f32 %v862, %v981
      %v983 = vpop.f32.mrf.mxu0
      %984 = vmatprep.mubr.bf16.mxu0 0
      %985 = vmatmul.mubr.bf16.gmra.mxu0 %v830
      %v986 = vpop.f32.mrf.mxu0
      %v987 = vadd.f32 %v862, %v986
      %v988 = vpop.f32.mrf.mxu0
      %v989 = vpop.f32.mrf.mxu0
      %v990 = vadd.f32 %v862, %v989
      %v991 = vpop.f32.mrf.mxu0
      %992 = vmatprep.mubr.bf16.mxu0 0
      %993 = vmatmul.mubr.bf16.gmra.mxu0 %v831
      %v994 = vpop.f32.mrf.mxu0
      %v995 = vadd.f32 %v862, %v994
      %v996 = vpop.f32.mrf.mxu0
      %v997 = vpop.f32.mrf.mxu0
      %v998 = vadd.f32 %v862, %v997
      %v999 = vpop.f32.mrf.mxu0
      %1000 = vmatprep.mubr.bf16.mxu0 0
      %1001 = vmatmul.mubr.bf16.gmra.mxu0 %v832
      %v1002 = vpop.f32.mrf.mxu0
      %v1003 = vadd.f32 %v862, %v1002
      %v1004 = vpop.f32.mrf.mxu0
      %v1005 = vpop.f32.mrf.mxu0
      %v1006 = vadd.f32 %v862, %v1005
      %v1007 = vpop.f32.mrf.mxu0
      %1008 = vmatprep.mubr.bf16.mxu0 0
      %1009 = vmatmul.mubr.bf16.gmra.mxu0 %v833
      %v1010 = vpop.f32.mrf.mxu0
      %v1011 = vadd.f32 %v862, %v1010
      %v1012 = vpop.f32.mrf.mxu0
      %v1013 = vpop.f32.mrf.mxu0
      %v1014 = vadd.f32 %v862, %v1013
      %v1015 = vpop.f32.mrf.mxu0
      %1016 = vmatprep.mubr.bf16.mxu0 0
      %1017 = vmatmul.mubr.bf16.gmra.mxu0 %v834
      %v1018 = vpop.f32.mrf.mxu0
      %v1019 = vadd.f32 %v862, %v1018
      %v1020 = vpop.f32.mrf.mxu0
      %v1021 = vpop.f32.mrf.mxu0
      %v1022 = vadd.f32 %v862, %v1021
      %v1023 = vpop.f32.mrf.mxu0
      %1024 = vmatprep.mubr.bf16.mxu0 0
      %1025 = vmatmul.mubr.bf16.gmra.mxu0 %v835
      %v1026 = vpop.f32.mrf.mxu0
      %v1027 = vadd.f32 %v862, %v1026
      %v1028 = vpop.f32.mrf.mxu0
      %v1029 = vpop.f32.mrf.mxu0
      %v1030 = vadd.f32 %v862, %v1029
      %v1031 = vpop.f32.mrf.mxu0
      %1032 = vmatprep.mubr.bf16.mxu0 0
      %1033 = vmatmul.mubr.bf16.gmra.mxu0 %v836
      %v1034 = vpop.f32.mrf.mxu0
      %v1035 = vadd.f32 %v862, %v1034
      %v1036 = vpop.f32.mrf.mxu0
      %v1037 = vpop.f32.mrf.mxu0
      %v1038 = vadd.f32 %v862, %v1037
      %v1039 = vpop.f32.mrf.mxu0
      %1040 = vmatprep.mubr.bf16.mxu0 0
      %1041 = vmatmul.mubr.bf16.gmra.mxu0 %v837
      %v1042 = vpop.f32.mrf.mxu0
      %v1043 = vadd.f32 %v862, %v1042
      %v1044 = vpop.f32.mrf.mxu0
      %v1045 = vpop.f32.mrf.mxu0
      %v1046 = vadd.f32 %v862, %v1045
      %v1047 = vpop.f32.mrf.mxu0
      %1048 = vmatprep.mubr.bf16.mxu0 0
      %1049 = vmatmul.mubr.bf16.gmra.mxu0 %v838
      %v1050 = vpop.f32.mrf.mxu0
      %v1051 = vadd.f32 %v862, %v1050
      %v1052 = vpop.f32.mrf.mxu0
      %v1053 = vpop.f32.mrf.mxu0
      %v1054 = vadd.f32 %v862, %v1053
      %v1055 = vpop.f32.mrf.mxu0
      %1056 = vmatprep.mubr.bf16.mxu0 0
      %1057 = vmatmul.mubr.bf16.gmra.mxu0 %v839
      %v1058 = vpop.f32.mrf.mxu0
      %v1059 = vadd.f32 %v862, %v1058
      %v1060 = vpop.f32.mrf.mxu0
      %v1061 = vpop.f32.mrf.mxu0
      %v1062 = vadd.f32 %v862, %v1061
      %v1063 = vpop.f32.mrf.mxu0
      %1064 = vmatprep.mubr.bf16.mxu0 0
      %1065 = vmatmul.mubr.bf16.gmra.mxu0 %v840
      %v1066 = vpop.f32.mrf.mxu0
      %v1067 = vadd.f32 %v862, %v1066
      %v1068 = vpop.f32.mrf.mxu0
      %v1069 = vpop.f32.mrf.mxu0
      %v1070 = vadd.f32 %v862, %v1069
      %v1071 = vpop.f32.mrf.mxu0
      %1072 = vdwg.mxu0
      %vm1073 = vcmp.gt.f32.partialorder %v947, 0.0
      %vm1074 = vcmp.gt.f32.partialorder %v950, 0.0
      %vm1075 = vcmp.gt.f32.partialorder %v955, 0.0
      %vm1076 = vcmp.gt.f32.partialorder %v958, 0.0
      %vm1077 = vcmp.gt.f32.partialorder %v963, 0.0
      %vm1078 = vcmp.gt.f32.partialorder %v966, 0.0
      %vm1079 = vcmp.gt.f32.partialorder %v971, 0.0
      %vm1080 = vcmp.gt.f32.partialorder %v974, 0.0
      %vm1081 = vcmp.gt.f32.partialorder %v979, 0.0
      %vm1082 = vcmp.gt.f32.partialorder %v982, 0.0
      %vm1083 = vcmp.gt.f32.partialorder %v987, 0.0
      %vm1084 = vcmp.gt.f32.partialorder %v990, 0.0
      %vm1085 = vcmp.gt.f32.partialorder %v995, 0.0
      %vm1086 = vcmp.gt.f32.partialorder %v998, 0.0
      %vm1087 = vcmp.gt.f32.partialorder %v1003, 0.0
      %vm1088 = vcmp.gt.f32.partialorder %v1006, 0.0
      %vm1089 = vcmp.gt.f32.partialorder %v1011, 0.0
      %vm1090 = vcmp.gt.f32.partialorder %v1014, 0.0
      %vm1091 = vcmp.gt.f32.partialorder %v1019, 0.0
      %vm1092 = vcmp.gt.f32.partialorder %v1022, 0.0
      %vm1093 = vcmp.gt.f32.partialorder %v1027, 0.0
      %vm1094 = vcmp.gt.f32.partialorder %v1030, 0.0
      %vm1095 = vcmp.gt.f32.partialorder %v1035, 0.0
      %vm1096 = vcmp.gt.f32.partialorder %v1038, 0.0
      %vm1097 = vcmp.gt.f32.partialorder %v1043, 0.0
      %vm1098 = vcmp.gt.f32.partialorder %v1046, 0.0
      %vm1099 = vcmp.gt.f32.partialorder %v1051, 0.0
      %vm1100 = vcmp.gt.f32.partialorder %v1054, 0.0
      %vm1101 = vcmp.gt.f32.partialorder %v1059, 0.0
      %vm1102 = vcmp.gt.f32.partialorder %v1062, 0.0
      %vm1103 = vcmp.gt.f32.partialorder %v1067, 0.0
      %vm1104 = vcmp.gt.f32.partialorder %v1070, 0.0
      %v1105 = vmin.f32 %v947, 0.0
      %v1106 = vmin.f32 %v950, 0.0
      %v1107 = vmin.f32 %v955, 0.0
      %v1108 = vmin.f32 %v958, 0.0
      %v1109 = vmin.f32 %v963, 0.0
      %v1110 = vmin.f32 %v966, 0.0
      %v1111 = vmin.f32 %v971, 0.0
      %v1112 = vmin.f32 %v974, 0.0
      %v1113 = vmin.f32 %v979, 0.0
      %v1114 = vmin.f32 %v982, 0.0
      %v1115 = vmin.f32 %v987, 0.0
      %v1116 = vmin.f32 %v990, 0.0
      %v1117 = vmin.f32 %v995, 0.0
      %v1118 = vmin.f32 %v998, 0.0
      %v1119 = vmin.f32 %v1003, 0.0
      %v1120 = vmin.f32 %v1006, 0.0
      %v1121 = vmin.f32 %v1011, 0.0
      %v1122 = vmin.f32 %v1014, 0.0
      %v1123 = vmin.f32 %v1019, 0.0
      %v1124 = vmin.f32 %v1022, 0.0
      %v1125 = vmin.f32 %v1027, 0.0
      %v1126 = vmin.f32 %v1030, 0.0
      %v1127 = vmin.f32 %v1035, 0.0
      %v1128 = vmin.f32 %v1038, 0.0
      %v1129 = vmin.f32 %v1043, 0.0
      %v1130 = vmin.f32 %v1046, 0.0
      %v1131 = vmin.f32 %v1051, 0.0
      %v1132 = vmin.f32 %v1054, 0.0
      %v1133 = vmin.f32 %v1059, 0.0
      %v1134 = vmin.f32 %v1062, 0.0
      %v1135 = vmin.f32 %v1067, 0.0
      %v1136 = vmin.f32 %v1070, 0.0
      %v1137 = vmul.f32 %v1105, 1.442695
      %v1138 = vpow.pop %v1137
      %v1139 = vmul.f32 %v1106, 1.442695
      %v1140 = vpow.pop %v1139
      %v1141 = vmul.f32 %v1107, 1.442695
      %v1142 = vpow.pop %v1141
      %v1143 = vmul.f32 %v1108, 1.442695
      %v1144 = vpow.pop %v1143
      %v1145 = vmul.f32 %v1109, 1.442695
      %v1146 = vpow.pop %v1145
      %v1147 = vmul.f32 %v1110, 1.442695
      %v1148 = vpow.pop %v1147
      %v1149 = vmul.f32 %v1111, 1.442695
      %v1150 = vpow.pop %v1149
      %v1151 = vmul.f32 %v1112, 1.442695
      %v1152 = vpow.pop %v1151
      %v1153 = vmul.f32 %v1113, 1.442695
      %v1154 = vpow.pop %v1153
      %v1155 = vmul.f32 %v1114, 1.442695
      %v1156 = vpow.pop %v1155
      %v1157 = vmul.f32 %v1115, 1.442695
      %v1158 = vpow.pop %v1157
      %v1159 = vmul.f32 %v1116, 1.442695
      %v1160 = vpow.pop %v1159
      %v1161 = vmul.f32 %v1117, 1.442695
      %v1162 = vpow.pop %v1161
      %v1163 = vmul.f32 %v1118, 1.442695
      %v1164 = vpow.pop %v1163
      %v1165 = vmul.f32 %v1119, 1.442695
      %v1166 = vpow.pop %v1165
      %v1167 = vmul.f32 %v1120, 1.442695
      %v1168 = vpow.pop %v1167
      %v1169 = vmul.f32 %v1121, 1.442695
      %v1170 = vpow.pop %v1169
      %v1171 = vmul.f32 %v1122, 1.442695
      %v1172 = vpow.pop %v1171
      %v1173 = vmul.f32 %v1123, 1.442695
      %v1174 = vpow.pop %v1173
      %v1175 = vmul.f32 %v1124, 1.442695
      %v1176 = vpow.pop %v1175
      %v1177 = vmul.f32 %v1125, 1.442695
      %v1178 = vpow.pop %v1177
      %v1179 = vmul.f32 %v1126, 1.442695
      %v1180 = vpow.pop %v1179
      %v1181 = vmul.f32 %v1127, 1.442695
      %v1182 = vpow.pop %v1181
      %v1183 = vmul.f32 %v1128, 1.442695
      %v1184 = vpow.pop %v1183
      %v1185 = vmul.f32 %v1129, 1.442695
      %v1186 = vpow.pop %v1185
      %v1187 = vmul.f32 %v1130, 1.442695
      %v1188 = vpow.pop %v1187
      %v1189 = vmul.f32 %v1131, 1.442695
      %v1190 = vpow.pop %v1189
      %v1191 = vmul.f32 %v1132, 1.442695
      %v1192 = vpow.pop %v1191
      %v1193 = vmul.f32 %v1133, 1.442695
      %v1194 = vpow.pop %v1193
      %v1195 = vmul.f32 %v1134, 1.442695
      %v1196 = vpow.pop %v1195
      %v1197 = vmul.f32 %v1135, 1.442695
      %v1198 = vpow.pop %v1197
      %v1199 = vmul.f32 %v1136, 1.442695
      %v1200 = vpow.pop %v1199
      %v1201 = vsub.f32 %v1138, 1.0
      %v1202 = vsub.f32 %v1140, 1.0
      %v1203 = vsub.f32 %v1142, 1.0
      %v1204 = vsub.f32 %v1144, 1.0
      %v1205 = vsub.f32 %v1146, 1.0
      %v1206 = vsub.f32 %v1148, 1.0
      %v1207 = vsub.f32 %v1150, 1.0
      %v1208 = vsub.f32 %v1152, 1.0
      %v1209 = vsub.f32 %v1154, 1.0
      %v1210 = vsub.f32 %v1156, 1.0
      %v1211 = vsub.f32 %v1158, 1.0
      %v1212 = vsub.f32 %v1160, 1.0
      %v1213 = vsub.f32 %v1162, 1.0
      %v1214 = vsub.f32 %v1164, 1.0
      %v1215 = vsub.f32 %v1166, 1.0
      %v1216 = vsub.f32 %v1168, 1.0
      %v1217 = vsub.f32 %v1170, 1.0
      %v1218 = vsub.f32 %v1172, 1.0
      %v1219 = vsub.f32 %v1174, 1.0
      %v1220 = vsub.f32 %v1176, 1.0
      %v1221 = vsub.f32 %v1178, 1.0
      %v1222 = vsub.f32 %v1180, 1.0
      %v1223 = vsub.f32 %v1182, 1.0
      %v1224 = vsub.f32 %v1184, 1.0
      %v1225 = vsub.f32 %v1186, 1.0
      %v1226 = vsub.f32 %v1188, 1.0
      %v1227 = vsub.f32 %v1190, 1.0
      %v1228 = vsub.f32 %v1192, 1.0
      %v1229 = vsub.f32 %v1194, 1.0
      %v1230 = vsub.f32 %v1196, 1.0
      %v1231 = vsub.f32 %v1198, 1.0
      %v1232 = vsub.f32 %v1200, 1.0
      %v1233 = vmul.f32 %v1201, 1.6732632
      %v1234 = vmul.f32 %v1202, 1.6732632
      %v1235 = vmul.f32 %v1203, 1.6732632
      %v1236 = vmul.f32 %v1204, 1.6732632
      %v1237 = vmul.f32 %v1205, 1.6732632
      %v1238 = vmul.f32 %v1206, 1.6732632
      %v1239 = vmul.f32 %v1207, 1.6732632
      %v1240 = vmul.f32 %v1208, 1.6732632
      %v1241 = vmul.f32 %v1209, 1.6732632
      %v1242 = vmul.f32 %v1210, 1.6732632
      %v1243 = vmul.f32 %v1211, 1.6732632
      %v1244 = vmul.f32 %v1212, 1.6732632
      %v1245 = vmul.f32 %v1213, 1.6732632
      %v1246 = vmul.f32 %v1214, 1.6732632
      %v1247 = vmul.f32 %v1215, 1.6732632
      %v1248 = vmul.f32 %v1216, 1.6732632
      %v1249 = vmul.f32 %v1217, 1.6732632
      %v1250 = vmul.f32 %v1218, 1.6732632
      %v1251 = vmul.f32 %v1219, 1.6732632
      %v1252 = vmul.f32 %v1220, 1.6732632
      %v1253 = vmul.f32 %v1221, 1.6732632
      %v1254 = vmul.f32 %v1222, 1.6732632
      %v1255 = vmul.f32 %v1223, 1.6732632
      %v1256 = vmul.f32 %v1224, 1.6732632
      %v1257 = vmul.f32 %v1225, 1.6732632
      %v1258 = vmul.f32 %v1226, 1.6732632
      %v1259 = vmul.f32 %v1227, 1.6732632
      %v1260 = vmul.f32 %v1228, 1.6732632
      %v1261 = vmul.f32 %v1229, 1.6732632
      %v1262 = vmul.f32 %v1230, 1.6732632
      %v1263 = vmul.f32 %v1231, 1.6732632
      %v1264 = vmul.f32 %v1232, 1.6732632
      %v1265 = vsel %vm1073, %v947, %v1233
      %v1266 = vsel %vm1074, %v950, %v1234
      %v1267 = vsel %vm1075, %v955, %v1235
      %v1268 = vsel %vm1076, %v958, %v1236
      %v1269 = vsel %vm1077, %v963, %v1237
      %v1270 = vsel %vm1078, %v966, %v1238
      %v1271 = vsel %vm1079, %v971, %v1239
      %v1272 = vsel %vm1080, %v974, %v1240
      %v1273 = vsel %vm1081, %v979, %v1241
      %v1274 = vsel %vm1082, %v982, %v1242
      %v1275 = vsel %vm1083, %v987, %v1243
      %v1276 = vsel %vm1084, %v990, %v1244
      %v1277 = vsel %vm1085, %v995, %v1245
      %v1278 = vsel %vm1086, %v998, %v1246
      %v1279 = vsel %vm1087, %v1003, %v1247
      %v1280 = vsel %vm1088, %v1006, %v1248
      %v1281 = vsel %vm1089, %v1011, %v1249
      %v1282 = vsel %vm1090, %v1014, %v1250
      %v1283 = vsel %vm1091, %v1019, %v1251
      %v1284 = vsel %vm1092, %v1022, %v1252
      %v1285 = vsel %vm1093, %v1027, %v1253
      %v1286 = vsel %vm1094, %v1030, %v1254
      %v1287 = vsel %vm1095, %v1035, %v1255
      %v1288 = vsel %vm1096, %v1038, %v1256
      %v1289 = vsel %vm1097, %v1043, %v1257
      %v1290 = vsel %vm1098, %v1046, %v1258
      %v1291 = vsel %vm1099, %v1051, %v1259
      %v1292 = vsel %vm1100, %v1054, %v1260
      %v1293 = vsel %vm1101, %v1059, %v1261
      %v1294 = vsel %vm1102, %v1062, %v1262
      %v1295 = vsel %vm1103, %v1067, %v1263
      %v1296 = vsel %vm1104, %v1070, %v1264
      %v1297 = vmul.f32 %v1265, 1.050701
      %v1298 = vmul.f32 %v1266, 1.050701
      %v1299 = vmul.f32 %v1267, 1.050701
      %v1300 = vmul.f32 %v1268, 1.050701
      %v1301 = vmul.f32 %v1269, 1.050701
      %v1302 = vmul.f32 %v1270, 1.050701
      %v1303 = vmul.f32 %v1271, 1.050701
      %v1304 = vmul.f32 %v1272, 1.050701
      %v1305 = vmul.f32 %v1273, 1.050701
      %v1306 = vmul.f32 %v1274, 1.050701
      %v1307 = vmul.f32 %v1275, 1.050701
      %v1308 = vmul.f32 %v1276, 1.050701
      %v1309 = vmul.f32 %v1277, 1.050701
      %v1310 = vmul.f32 %v1278, 1.050701
      %v1311 = vmul.f32 %v1279, 1.050701
      %v1312 = vmul.f32 %v1280, 1.050701
      %v1313 = vmul.f32 %v1281, 1.050701
      %v1314 = vmul.f32 %v1282, 1.050701
      %v1315 = vmul.f32 %v1283, 1.050701
      %v1316 = vmul.f32 %v1284, 1.050701
      %v1317 = vmul.f32 %v1285, 1.050701
      %v1318 = vmul.f32 %v1286, 1.050701
      %v1319 = vmul.f32 %v1287, 1.050701
      %v1320 = vmul.f32 %v1288, 1.050701
      %v1321 = vmul.f32 %v1289, 1.050701
      %v1322 = vmul.f32 %v1290, 1.050701
      %v1323 = vmul.f32 %v1291, 1.050701
      %v1324 = vmul.f32 %v1292, 1.050701
      %v1325 = vmul.f32 %v1293, 1.050701
      %v1326 = vmul.f32 %v1294, 1.050701
      %v1327 = vmul.f32 %v1295, 1.050701
      %v1328 = vmul.f32 %v1296, 1.050701
      %v1329 = vpack.c.bf16 %v1298, %v1297
      %v1330 = vpack.c.bf16 %v1300, %v1299
      %v1331 = vpack.c.bf16 %v1302, %v1301
      %v1332 = vpack.c.bf16 %v1304, %v1303
      %v1333 = vpack.c.bf16 %v1306, %v1305
      %v1334 = vpack.c.bf16 %v1308, %v1307
      %v1335 = vpack.c.bf16 %v1310, %v1309
      %v1336 = vpack.c.bf16 %v1312, %v1311
      %v1337 = vpack.c.bf16 %v1314, %v1313
      %v1338 = vpack.c.bf16 %v1316, %v1315
      %v1339 = vpack.c.bf16 %v1318, %v1317
      %v1340 = vpack.c.bf16 %v1320, %v1319
      %v1341 = vpack.c.bf16 %v1322, %v1321
      %v1342 = vpack.c.bf16 %v1324, %v1323
      %v1343 = vpack.c.bf16 %v1326, %v1325
      %v1344 = vpack.c.bf16 %v1328, %v1327
      %v1345 = vld [vmem:[%s5] sm:$0xff]
      %v1346 = vld [vmem:[%s5 + $0x8] sm:$0xff]
      %v1347 = vld [vmem:[%s5 + $0x10] sm:$0xff]
      %v1348 = vld [vmem:[%s5 + $0x18] sm:$0xff]
      %v1349 = vld [vmem:[%s5 + $0x20] sm:$0xff]
      %v1350 = vld [vmem:[%s5 + $0x28] sm:$0xff]
      %v1351 = vld [vmem:[%s5 + $0x30] sm:$0xff]
      %v1352 = vld [vmem:[%s5 + $0x38] sm:$0xff]
      %v1353 = vld [vmem:[%s5 + $0x40] sm:$0xff]
      %v1354 = vld [vmem:[%s5 + $0x48] sm:$0xff]
      %v1355 = vld [vmem:[%s5 + $0x50] sm:$0xff]
      %v1356 = vld [vmem:[%s5 + $0x58] sm:$0xff]
      %v1357 = vld [vmem:[%s5 + $0x60] sm:$0xff]
      %v1358 = vld [vmem:[%s5 + $0x68] sm:$0xff]
      %v1359 = vld [vmem:[%s5 + $0x70] sm:$0xff]
      %v1360 = vld [vmem:[%s5 + $0x78] sm:$0xff]
      %v1361 = vld [vmem:[%s6] sm:$0x3]
      %v1363 = vlaneseq
      %v1364 = vshrl.u32 %v1363, 7
      %v1365 = vsub.s32 0, %v1364
      %v1366 = vrot.slane %v1361, %v1365
      %v1367 = vlaneseq
      %v1368 = vshrl.u32 %v1367, 7
      %v1369 = vsub.s32 1, %v1368
      %v1370 = vrot.slane %v1361, %v1369
      %v1389 = vunpack.c.l.b16 %v1345
      %v1390 = vunpack.c.h.b16 %v1345
      %v1391 = vunpack.c.l.b16 %v1346
      %v1392 = vunpack.c.h.b16 %v1346
      %v1393 = vunpack.c.l.b16 %v1347
      %v1394 = vunpack.c.h.b16 %v1347
      %v1395 = vunpack.c.l.b16 %v1348
      %v1396 = vunpack.c.h.b16 %v1348
      %v1397 = vunpack.c.l.b16 %v1349
      %v1398 = vunpack.c.h.b16 %v1349
      %v1399 = vunpack.c.l.b16 %v1350
      %v1400 = vunpack.c.h.b16 %v1350
      %v1401 = vunpack.c.l.b16 %v1351
      %v1402 = vunpack.c.h.b16 %v1351
      %v1403 = vunpack.c.l.b16 %v1352
      %v1404 = vunpack.c.h.b16 %v1352
      %v1405 = vunpack.c.l.b16 %v1353
      %v1406 = vunpack.c.h.b16 %v1353
      %v1407 = vunpack.c.l.b16 %v1354
      %v1408 = vunpack.c.h.b16 %v1354
      %v1409 = vunpack.c.l.b16 %v1355
      %v1410 = vunpack.c.h.b16 %v1355
      %v1411 = vunpack.c.l.b16 %v1356
      %v1412 = vunpack.c.h.b16 %v1356
      %v1413 = vunpack.c.l.b16 %v1357
      %v1414 = vunpack.c.h.b16 %v1357
      %v1415 = vunpack.c.l.b16 %v1358
      %v1416 = vunpack.c.h.b16 %v1358
      %v1417 = vunpack.c.l.b16 %v1359
      %v1418 = vunpack.c.h.b16 %v1359
      %v1419 = vunpack.c.l.b16 %v1360
      %v1420 = vunpack.c.h.b16 %v1360
      %v1421 = vpack.c.b16 %v1391, %v1389
      %v1422 = vpack.c.b16 %v1392, %v1390
      %v1423 = vpack.c.b16 %v1395, %v1393
      %v1424 = vpack.c.b16 %v1396, %v1394
      %v1425 = vpack.c.b16 %v1399, %v1397
      %v1426 = vpack.c.b16 %v1400, %v1398
      %v1427 = vpack.c.b16 %v1403, %v1401
      %v1428 = vpack.c.b16 %v1404, %v1402
      %v1429 = vpack.c.b16 %v1407, %v1405
      %v1430 = vpack.c.b16 %v1408, %v1406
      %v1431 = vpack.c.b16 %v1411, %v1409
      %v1432 = vpack.c.b16 %v1412, %v1410
      %v1433 = vpack.c.b16 %v1415, %v1413
      %v1434 = vpack.c.b16 %v1416, %v1414
      %v1435 = vpack.c.b16 %v1419, %v1417
      %v1436 = vpack.c.b16 %v1420, %v1418
      %1453 = vmatprep.subr.bf16.mxu0 %v1436
      %1454 = vmatpush1.bf16.msra.mxu0 %v1435
      %1455 = vmatprep.subr.bf16.mxu0 %v1434
      %1456 = vmatpush1.bf16.msra.mxu0 %v1433
      %1457 = vmatprep.subr.bf16.mxu0 %v1432
      %1458 = vmatpush1.bf16.msra.mxu0 %v1431
      %1459 = vmatprep.subr.bf16.mxu0 %v1430
      %1460 = vmatpush1.bf16.msra.mxu0 %v1429
      %1461 = vmatprep.subr.bf16.mxu0 %v1428
      %1462 = vmatpush1.bf16.msra.mxu0 %v1427
      %1463 = vmatprep.subr.bf16.mxu0 %v1426
      %1464 = vmatpush1.bf16.msra.mxu0 %v1425
      %1465 = vmatprep.subr.bf16.mxu0 %v1424
      %1466 = vmatpush1.bf16.msra.mxu0 %v1423
      %1467 = vmatprep.subr.bf16.mxu0 %v1422
      %1468 = vmatpush1.bf16.msra.mxu0 %v1421
      %1469 = vmatprep.subr.bf16.mxu0 0
      %1470 = vmatpush2.bf16.msra.mxu0 0
      %1471 = vmatprep.subr.bf16.mxu0 0
      %1472 = vmatpush2.bf16.msra.mxu0 0
      %1473 = vmatprep.subr.bf16.mxu0 0
      %1474 = vmatpush2.bf16.msra.mxu0 0
      %1475 = vmatprep.subr.bf16.mxu0 0
      %1476 = vmatpush2.bf16.msra.mxu0 0
      %1477 = vmatprep.subr.bf16.mxu0 0
      %1478 = vmatpush2.bf16.msra.mxu0 0
      %1479 = vmatprep.subr.bf16.mxu0 0
      %1480 = vmatpush2.bf16.msra.mxu0 0
      %1481 = vmatprep.subr.bf16.mxu0 0
      %1482 = vmatpush2.bf16.msra.mxu0 0
      %1483 = vmatprep.subr.bf16.mxu0 0
      %1484 = vmatpush2.bf16.msra.mxu0 0
      %1485 = vmatprep.mubr.bf16.mxu0 0
      %1486 = vmatmul.mubr.bf16.gmra.mxu0 %v1329
      %v1487 = vpop.f32.mrf.mxu0
      %v1488 = vadd.f32 %v1366, %v1487
      %v1489 = vpop.f32.mrf.mxu0
      %v1490 = vadd.f32 %v1370, %v1489
      %v1491 = vpop.f32.mrf.mxu0
      %v1492 = vadd.f32 %v1366, %v1491
      %v1493 = vpop.f32.mrf.mxu0
      %v1494 = vadd.f32 %v1370, %v1493
      %1495 = vmatprep.mubr.bf16.mxu0 0
      %1496 = vmatmul.mubr.bf16.gmra.mxu0 %v1330
      %v1497 = vpop.f32.mrf.mxu0
      %v1498 = vadd.f32 %v1366, %v1497
      %v1499 = vpop.f32.mrf.mxu0
      %v1500 = vadd.f32 %v1370, %v1499
      %v1501 = vpop.f32.mrf.mxu0
      %v1502 = vadd.f32 %v1366, %v1501
      %v1503 = vpop.f32.mrf.mxu0
      %v1504 = vadd.f32 %v1370, %v1503
      %1505 = vmatprep.mubr.bf16.mxu0 0
      %1506 = vmatmul.mubr.bf16.gmra.mxu0 %v1331
      %v1507 = vpop.f32.mrf.mxu0
      %v1508 = vadd.f32 %v1366, %v1507
      %v1509 = vpop.f32.mrf.mxu0
      %v1510 = vadd.f32 %v1370, %v1509
      %v1511 = vpop.f32.mrf.mxu0
      %v1512 = vadd.f32 %v1366, %v1511
      %v1513 = vpop.f32.mrf.mxu0
      %v1514 = vadd.f32 %v1370, %v1513
      %1515 = vmatprep.mubr.bf16.mxu0 0
      %1516 = vmatmul.mubr.bf16.gmra.mxu0 %v1332
      %v1517 = vpop.f32.mrf.mxu0
      %v1518 = vadd.f32 %v1366, %v1517
      %v1519 = vpop.f32.mrf.mxu0
      %v1520 = vadd.f32 %v1370, %v1519
      %v1521 = vpop.f32.mrf.mxu0
      %v1522 = vadd.f32 %v1366, %v1521
      %v1523 = vpop.f32.mrf.mxu0
      %v1524 = vadd.f32 %v1370, %v1523
      %1525 = vmatprep.mubr.bf16.mxu0 0
      %1526 = vmatmul.mubr.bf16.gmra.mxu0 %v1333
      %v1527 = vpop.f32.mrf.mxu0
      %v1528 = vadd.f32 %v1366, %v1527
      %v1529 = vpop.f32.mrf.mxu0
      %v1530 = vadd.f32 %v1370, %v1529
      %v1531 = vpop.f32.mrf.mxu0
      %v1532 = vadd.f32 %v1366, %v1531
      %v1533 = vpop.f32.mrf.mxu0
      %v1534 = vadd.f32 %v1370, %v1533
      %1535 = vmatprep.mubr.bf16.mxu0 0
      %1536 = vmatmul.mubr.bf16.gmra.mxu0 %v1334
      %v1537 = vpop.f32.mrf.mxu0
      %v1538 = vadd.f32 %v1366, %v1537
      %v1539 = vpop.f32.mrf.mxu0
      %v1540 = vadd.f32 %v1370, %v1539
      %v1541 = vpop.f32.mrf.mxu0
      %v1542 = vadd.f32 %v1366, %v1541
      %v1543 = vpop.f32.mrf.mxu0
      %v1544 = vadd.f32 %v1370, %v1543
      %1545 = vmatprep.mubr.bf16.mxu0 0
      %1546 = vmatmul.mubr.bf16.gmra.mxu0 %v1335
      %v1547 = vpop.f32.mrf.mxu0
      %v1548 = vadd.f32 %v1366, %v1547
      %v1549 = vpop.f32.mrf.mxu0
      %v1550 = vadd.f32 %v1370, %v1549
      %v1551 = vpop.f32.mrf.mxu0
      %v1552 = vadd.f32 %v1366, %v1551
      %v1553 = vpop.f32.mrf.mxu0
      %v1554 = vadd.f32 %v1370, %v1553
      %1555 = vmatprep.mubr.bf16.mxu0 0
      %1556 = vmatmul.mubr.bf16.gmra.mxu0 %v1336
      %v1557 = vpop.f32.mrf.mxu0
      %v1558 = vadd.f32 %v1366, %v1557
      %v1559 = vpop.f32.mrf.mxu0
      %v1560 = vadd.f32 %v1370, %v1559
      %v1561 = vpop.f32.mrf.mxu0
      %v1562 = vadd.f32 %v1366, %v1561
      %v1563 = vpop.f32.mrf.mxu0
      %v1564 = vadd.f32 %v1370, %v1563
      %1565 = vmatprep.mubr.bf16.mxu0 0
      %1566 = vmatmul.mubr.bf16.gmra.mxu0 %v1337
      %v1567 = vpop.f32.mrf.mxu0
      %v1568 = vadd.f32 %v1366, %v1567
      %v1569 = vpop.f32.mrf.mxu0
      %v1570 = vadd.f32 %v1370, %v1569
      %v1571 = vpop.f32.mrf.mxu0
      %v1572 = vadd.f32 %v1366, %v1571
      %v1573 = vpop.f32.mrf.mxu0
      %v1574 = vadd.f32 %v1370, %v1573
      %1575 = vmatprep.mubr.bf16.mxu0 0
      %1576 = vmatmul.mubr.bf16.gmra.mxu0 %v1338
      %v1577 = vpop.f32.mrf.mxu0
      %v1578 = vadd.f32 %v1366, %v1577
      %v1579 = vpop.f32.mrf.mxu0
      %v1580 = vadd.f32 %v1370, %v1579
      %v1581 = vpop.f32.mrf.mxu0
      %v1582 = vadd.f32 %v1366, %v1581
      %v1583 = vpop.f32.mrf.mxu0
      %v1584 = vadd.f32 %v1370, %v1583
      %1585 = vmatprep.mubr.bf16.mxu0 0
      %1586 = vmatmul.mubr.bf16.gmra.mxu0 %v1339
      %v1587 = vpop.f32.mrf.mxu0
      %v1588 = vadd.f32 %v1366, %v1587
      %v1589 = vpop.f32.mrf.mxu0
      %v1590 = vadd.f32 %v1370, %v1589
      %v1591 = vpop.f32.mrf.mxu0
      %v1592 = vadd.f32 %v1366, %v1591
      %v1593 = vpop.f32.mrf.mxu0
      %v1594 = vadd.f32 %v1370, %v1593
      %1595 = vmatprep.mubr.bf16.mxu0 0
      %1596 = vmatmul.mubr.bf16.gmra.mxu0 %v1340
      %v1597 = vpop.f32.mrf.mxu0
      %v1598 = vadd.f32 %v1366, %v1597
      %v1599 = vpop.f32.mrf.mxu0
      %v1600 = vadd.f32 %v1370, %v1599
      %v1601 = vpop.f32.mrf.mxu0
      %v1602 = vadd.f32 %v1366, %v1601
      %v1603 = vpop.f32.mrf.mxu0
      %v1604 = vadd.f32 %v1370, %v1603
      %1605 = vmatprep.mubr.bf16.mxu0 0
      %1606 = vmatmul.mubr.bf16.gmra.mxu0 %v1341
      %v1607 = vpop.f32.mrf.mxu0
      %v1608 = vadd.f32 %v1366, %v1607
      %v1609 = vpop.f32.mrf.mxu0
      %v1610 = vadd.f32 %v1370, %v1609
      %v1611 = vpop.f32.mrf.mxu0
      %v1612 = vadd.f32 %v1366, %v1611
      %v1613 = vpop.f32.mrf.mxu0
      %v1614 = vadd.f32 %v1370, %v1613
      %1615 = vmatprep.mubr.bf16.mxu0 0
      %1616 = vmatmul.mubr.bf16.gmra.mxu0 %v1342
      %v1617 = vpop.f32.mrf.mxu0
      %v1618 = vadd.f32 %v1366, %v1617
      %v1619 = vpop.f32.mrf.mxu0
      %v1620 = vadd.f32 %v1370, %v1619
      %v1621 = vpop.f32.mrf.mxu0
      %v1622 = vadd.f32 %v1366, %v1621
      %v1623 = vpop.f32.mrf.mxu0
      %v1624 = vadd.f32 %v1370, %v1623
      %1625 = vmatprep.mubr.bf16.mxu0 0
      %1626 = vmatmul.mubr.bf16.gmra.mxu0 %v1343
      %v1627 = vpop.f32.mrf.mxu0
      %v1628 = vadd.f32 %v1366, %v1627
      %v1629 = vpop.f32.mrf.mxu0
      %v1630 = vadd.f32 %v1370, %v1629
      %v1631 = vpop.f32.mrf.mxu0
      %v1632 = vadd.f32 %v1366, %v1631
      %v1633 = vpop.f32.mrf.mxu0
      %v1634 = vadd.f32 %v1370, %v1633
      %1635 = vmatprep.mubr.bf16.mxu0 0
      %1636 = vmatmul.mubr.bf16.gmra.mxu0 %v1344
      %v1637 = vpop.f32.mrf.mxu0
      %v1638 = vadd.f32 %v1366, %v1637
      %v1639 = vpop.f32.mrf.mxu0
      %v1640 = vadd.f32 %v1370, %v1639
      %v1641 = vpop.f32.mrf.mxu0
      %v1642 = vadd.f32 %v1366, %v1641
      %v1643 = vpop.f32.mrf.mxu0
      %v1644 = vadd.f32 %v1370, %v1643
      %1645 = vdwg.mxu0
      %vm1646 = vcmp.gt.f32.partialorder %v1488, 0.0
      %vm1647 = vcmp.gt.f32.partialorder %v1490, 0.0
      %vm1648 = vcmp.gt.f32.partialorder %v1492, 0.0
      %vm1649 = vcmp.gt.f32.partialorder %v1494, 0.0
      %vm1650 = vcmp.gt.f32.partialorder %v1498, 0.0
      %vm1651 = vcmp.gt.f32.partialorder %v1500, 0.0
      %vm1652 = vcmp.gt.f32.partialorder %v1502, 0.0
      %vm1653 = vcmp.gt.f32.partialorder %v1504, 0.0
      %vm1654 = vcmp.gt.f32.partialorder %v1508, 0.0
      %vm1655 = vcmp.gt.f32.partialorder %v1510, 0.0
      %vm1656 = vcmp.gt.f32.partialorder %v1512, 0.0
      %vm1657 = vcmp.gt.f32.partialorder %v1514, 0.0
      %vm1658 = vcmp.gt.f32.partialorder %v1518, 0.0
      %vm1659 = vcmp.gt.f32.partialorder %v1520, 0.0
      %vm1660 = vcmp.gt.f32.partialorder %v1522, 0.0
      %vm1661 = vcmp.gt.f32.partialorder %v1524, 0.0
      %vm1662 = vcmp.gt.f32.partialorder %v1528, 0.0
      %vm1663 = vcmp.gt.f32.partialorder %v1530, 0.0
      %vm1664 = vcmp.gt.f32.partialorder %v1532, 0.0
      %vm1665 = vcmp.gt.f32.partialorder %v1534, 0.0
      %vm1666 = vcmp.gt.f32.partialorder %v1538, 0.0
      %vm1667 = vcmp.gt.f32.partialorder %v1540, 0.0
      %vm1668 = vcmp.gt.f32.partialorder %v1542, 0.0
      %vm1669 = vcmp.gt.f32.partialorder %v1544, 0.0
      %vm1670 = vcmp.gt.f32.partialorder %v1548, 0.0
      %vm1671 = vcmp.gt.f32.partialorder %v1550, 0.0
      %vm1672 = vcmp.gt.f32.partialorder %v1552, 0.0
      %vm1673 = vcmp.gt.f32.partialorder %v1554, 0.0
      %vm1674 = vcmp.gt.f32.partialorder %v1558, 0.0
      %vm1675 = vcmp.gt.f32.partialorder %v1560, 0.0
      %vm1676 = vcmp.gt.f32.partialorder %v1562, 0.0
      %vm1677 = vcmp.gt.f32.partialorder %v1564, 0.0
      %vm1678 = vcmp.gt.f32.partialorder %v1568, 0.0
      %vm1679 = vcmp.gt.f32.partialorder %v1570, 0.0
      %vm1680 = vcmp.gt.f32.partialorder %v1572, 0.0
      %vm1681 = vcmp.gt.f32.partialorder %v1574, 0.0
      %vm1682 = vcmp.gt.f32.partialorder %v1578, 0.0
      %vm1683 = vcmp.gt.f32.partialorder %v1580, 0.0
      %vm1684 = vcmp.gt.f32.partialorder %v1582, 0.0
      %vm1685 = vcmp.gt.f32.partialorder %v1584, 0.0
      %vm1686 = vcmp.gt.f32.partialorder %v1588, 0.0
      %vm1687 = vcmp.gt.f32.partialorder %v1590, 0.0
      %vm1688 = vcmp.gt.f32.partialorder %v1592, 0.0
      %vm1689 = vcmp.gt.f32.partialorder %v1594, 0.0
      %vm1690 = vcmp.gt.f32.partialorder %v1598, 0.0
      %vm1691 = vcmp.gt.f32.partialorder %v1600, 0.0
      %vm1692 = vcmp.gt.f32.partialorder %v1602, 0.0
      %vm1693 = vcmp.gt.f32.partialorder %v1604, 0.0
      %vm1694 = vcmp.gt.f32.partialorder %v1608, 0.0
      %vm1695 = vcmp.gt.f32.partialorder %v1610, 0.0
      %vm1696 = vcmp.gt.f32.partialorder %v1612, 0.0
      %vm1697 = vcmp.gt.f32.partialorder %v1614, 0.0
      %vm1698 = vcmp.gt.f32.partialorder %v1618, 0.0
      %vm1699 = vcmp.gt.f32.partialorder %v1620, 0.0
      %vm1700 = vcmp.gt.f32.partialorder %v1622, 0.0
      %vm1701 = vcmp.gt.f32.partialorder %v1624, 0.0
      %vm1702 = vcmp.gt.f32.partialorder %v1628, 0.0
      %vm1703 = vcmp.gt.f32.partialorder %v1630, 0.0
      %vm1704 = vcmp.gt.f32.partialorder %v1632, 0.0
      %vm1705 = vcmp.gt.f32.partialorder %v1634, 0.0
      %vm1706 = vcmp.gt.f32.partialorder %v1638, 0.0
      %vm1707 = vcmp.gt.f32.partialorder %v1640, 0.0
      %vm1708 = vcmp.gt.f32.partialorder %v1642, 0.0
      %vm1709 = vcmp.gt.f32.partialorder %v1644, 0.0
      %v1710 = vmin.f32 %v1488, 0.0
      %v1711 = vmin.f32 %v1490, 0.0
      %v1712 = vmin.f32 %v1492, 0.0
      %v1713 = vmin.f32 %v1494, 0.0
      %v1714 = vmin.f32 %v1498, 0.0
      %v1715 = vmin.f32 %v1500, 0.0
      %v1716 = vmin.f32 %v1502, 0.0
      %v1717 = vmin.f32 %v1504, 0.0
      %v1718 = vmin.f32 %v1508, 0.0
      %v1719 = vmin.f32 %v1510, 0.0
      %v1720 = vmin.f32 %v1512, 0.0
      %v1721 = vmin.f32 %v1514, 0.0
      %v1722 = vmin.f32 %v1518, 0.0
      %v1723 = vmin.f32 %v1520, 0.0
      %v1724 = vmin.f32 %v1522, 0.0
      %v1725 = vmin.f32 %v1524, 0.0
      %v1726 = vmin.f32 %v1528, 0.0
      %v1727 = vmin.f32 %v1530, 0.0
      %v1728 = vmin.f32 %v1532, 0.0
      %v1729 = vmin.f32 %v1534, 0.0
      %v1730 = vmin.f32 %v1538, 0.0
      %v1731 = vmin.f32 %v1540, 0.0
      %v1732 = vmin.f32 %v1542, 0.0
      %v1733 = vmin.f32 %v1544, 0.0
      %v1734 = vmin.f32 %v1548, 0.0
      %v1735 = vmin.f32 %v1550, 0.0
      %v1736 = vmin.f32 %v1552, 0.0
      %v1737 = vmin.f32 %v1554, 0.0
      %v1738 = vmin.f32 %v1558, 0.0
      %v1739 = vmin.f32 %v1560, 0.0
      %v1740 = vmin.f32 %v1562, 0.0
      %v1741 = vmin.f32 %v1564, 0.0
      %v1742 = vmin.f32 %v1568, 0.0
      %v1743 = vmin.f32 %v1570, 0.0
      %v1744 = vmin.f32 %v1572, 0.0
      %v1745 = vmin.f32 %v1574, 0.0
      %v1746 = vmin.f32 %v1578, 0.0
      %v1747 = vmin.f32 %v1580, 0.0
      %v1748 = vmin.f32 %v1582, 0.0
      %v1749 = vmin.f32 %v1584, 0.0
      %v1750 = vmin.f32 %v1588, 0.0
      %v1751 = vmin.f32 %v1590, 0.0
      %v1752 = vmin.f32 %v1592, 0.0
      %v1753 = vmin.f32 %v1594, 0.0
      %v1754 = vmin.f32 %v1598, 0.0
      %v1755 = vmin.f32 %v1600, 0.0
      %v1756 = vmin.f32 %v1602, 0.0
      %v1757 = vmin.f32 %v1604, 0.0
      %v1758 = vmin.f32 %v1608, 0.0
      %v1759 = vmin.f32 %v1610, 0.0
      %v1760 = vmin.f32 %v1612, 0.0
      %v1761 = vmin.f32 %v1614, 0.0
      %v1762 = vmin.f32 %v1618, 0.0
      %v1763 = vmin.f32 %v1620, 0.0
      %v1764 = vmin.f32 %v1622, 0.0
      %v1765 = vmin.f32 %v1624, 0.0
      %v1766 = vmin.f32 %v1628, 0.0
      %v1767 = vmin.f32 %v1630, 0.0
      %v1768 = vmin.f32 %v1632, 0.0
      %v1769 = vmin.f32 %v1634, 0.0
      %v1770 = vmin.f32 %v1638, 0.0
      %v1771 = vmin.f32 %v1640, 0.0
      %v1772 = vmin.f32 %v1642, 0.0
      %v1773 = vmin.f32 %v1644, 0.0
      %v1774 = vmul.f32 %v1710, 1.442695
      %v1775 = vpow.pop %v1774
      %v1776 = vmul.f32 %v1711, 1.442695
      %v1777 = vpow.pop %v1776
      %v1778 = vmul.f32 %v1712, 1.442695
      %v1779 = vpow.pop %v1778
      %v1780 = vmul.f32 %v1713, 1.442695
      %v1781 = vpow.pop %v1780
      %v1782 = vmul.f32 %v1714, 1.442695
      %v1783 = vpow.pop %v1782
      %v1784 = vmul.f32 %v1715, 1.442695
      %v1785 = vpow.pop %v1784
      %v1786 = vmul.f32 %v1716, 1.442695
      %v1787 = vpow.pop %v1786
      %v1788 = vmul.f32 %v1717, 1.442695
      %v1789 = vpow.pop %v1788
      %v1790 = vmul.f32 %v1718, 1.442695
      %v1791 = vpow.pop %v1790
      %v1792 = vmul.f32 %v1719, 1.442695
      %v1793 = vpow.pop %v1792
      %v1794 = vmul.f32 %v1720, 1.442695
      %v1795 = vpow.pop %v1794
      %v1796 = vmul.f32 %v1721, 1.442695
      %v1797 = vpow.pop %v1796
      %v1798 = vmul.f32 %v1722, 1.442695
      %v1799 = vpow.pop %v1798
      %v1800 = vmul.f32 %v1723, 1.442695
      %v1801 = vpow.pop %v1800
      %v1802 = vmul.f32 %v1724, 1.442695
      %v1803 = vpow.pop %v1802
      %v1804 = vmul.f32 %v1725, 1.442695
      %v1805 = vpow.pop %v1804
      %v1806 = vmul.f32 %v1726, 1.442695
      %v1807 = vpow.pop %v1806
      %v1808 = vmul.f32 %v1727, 1.442695
      %v1809 = vpow.pop %v1808
      %v1810 = vmul.f32 %v1728, 1.442695
      %v1811 = vpow.pop %v1810
      %v1812 = vmul.f32 %v1729, 1.442695
      %v1813 = vpow.pop %v1812
      %v1814 = vmul.f32 %v1730, 1.442695
      %v1815 = vpow.pop %v1814
      %v1816 = vmul.f32 %v1731, 1.442695
      %v1817 = vpow.pop %v1816
      %v1818 = vmul.f32 %v1732, 1.442695
      %v1819 = vpow.pop %v1818
      %v1820 = vmul.f32 %v1733, 1.442695
      %v1821 = vpow.pop %v1820
      %v1822 = vmul.f32 %v1734, 1.442695
      %v1823 = vpow.pop %v1822
      %v1824 = vmul.f32 %v1735, 1.442695
      %v1825 = vpow.pop %v1824
      %v1826 = vmul.f32 %v1736, 1.442695
      %v1827 = vpow.pop %v1826
      %v1828 = vmul.f32 %v1737, 1.442695
      %v1829 = vpow.pop %v1828
      %v1830 = vmul.f32 %v1738, 1.442695
      %v1831 = vpow.pop %v1830
      %v1832 = vmul.f32 %v1739, 1.442695
      %v1833 = vpow.pop %v1832
      %v1834 = vmul.f32 %v1740, 1.442695
      %v1835 = vpow.pop %v1834
      %v1836 = vmul.f32 %v1741, 1.442695
      %v1837 = vpow.pop %v1836
      %v1838 = vmul.f32 %v1742, 1.442695
      %v1839 = vpow.pop %v1838
      %v1840 = vmul.f32 %v1743, 1.442695
      %v1841 = vpow.pop %v1840
      %v1842 = vmul.f32 %v1744, 1.442695
      %v1843 = vpow.pop %v1842
      %v1844 = vmul.f32 %v1745, 1.442695
      %v1845 = vpow.pop %v1844
      %v1846 = vmul.f32 %v1746, 1.442695
      %v1847 = vpow.pop %v1846
      %v1848 = vmul.f32 %v1747, 1.442695
      %v1849 = vpow.pop %v1848
      %v1850 = vmul.f32 %v1748, 1.442695
      %v1851 = vpow.pop %v1850
      %v1852 = vmul.f32 %v1749, 1.442695
      %v1853 = vpow.pop %v1852
      %v1854 = vmul.f32 %v1750, 1.442695
      %v1855 = vpow.pop %v1854
      %v1856 = vmul.f32 %v1751, 1.442695
      %v1857 = vpow.pop %v1856
      %v1858 = vmul.f32 %v1752, 1.442695
      %v1859 = vpow.pop %v1858
      %v1860 = vmul.f32 %v1753, 1.442695
      %v1861 = vpow.pop %v1860
      %v1862 = vmul.f32 %v1754, 1.442695
      %v1863 = vpow.pop %v1862
      %v1864 = vmul.f32 %v1755, 1.442695
      %v1865 = vpow.pop %v1864
      %v1866 = vmul.f32 %v1756, 1.442695
      %v1867 = vpow.pop %v1866
      %v1868 = vmul.f32 %v1757, 1.442695
      %v1869 = vpow.pop %v1868
      %v1870 = vmul.f32 %v1758, 1.442695
      %v1871 = vpow.pop %v1870
      %v1872 = vmul.f32 %v1759, 1.442695
      %v1873 = vpow.pop %v1872
      %v1874 = vmul.f32 %v1760, 1.442695
      %v1875 = vpow.pop %v1874
      %v1876 = vmul.f32 %v1761, 1.442695
      %v1877 = vpow.pop %v1876
      %v1878 = vmul.f32 %v1762, 1.442695
      %v1879 = vpow.pop %v1878
      %v1880 = vmul.f32 %v1763, 1.442695
      %v1881 = vpow.pop %v1880
      %v1882 = vmul.f32 %v1764, 1.442695
      %v1883 = vpow.pop %v1882
      %v1884 = vmul.f32 %v1765, 1.442695
      %v1885 = vpow.pop %v1884
      %v1886 = vmul.f32 %v1766, 1.442695
      %v1887 = vpow.pop %v1886
      %v1888 = vmul.f32 %v1767, 1.442695
      %v1889 = vpow.pop %v1888
      %v1890 = vmul.f32 %v1768, 1.442695
      %v1891 = vpow.pop %v1890
      %v1892 = vmul.f32 %v1769, 1.442695
      %v1893 = vpow.pop %v1892
      %v1894 = vmul.f32 %v1770, 1.442695
      %v1895 = vpow.pop %v1894
      %v1896 = vmul.f32 %v1771, 1.442695
      %v1897 = vpow.pop %v1896
      %v1898 = vmul.f32 %v1772, 1.442695
      %v1899 = vpow.pop %v1898
      %v1900 = vmul.f32 %v1773, 1.442695
      %v1901 = vpow.pop %v1900
      %v1902 = vsub.f32 %v1775, 1.0
      %v1903 = vsub.f32 %v1777, 1.0
      %v1904 = vsub.f32 %v1779, 1.0
      %v1905 = vsub.f32 %v1781, 1.0
      %v1906 = vsub.f32 %v1783, 1.0
      %v1907 = vsub.f32 %v1785, 1.0
      %v1908 = vsub.f32 %v1787, 1.0
      %v1909 = vsub.f32 %v1789, 1.0
      %v1910 = vsub.f32 %v1791, 1.0
      %v1911 = vsub.f32 %v1793, 1.0
      %v1912 = vsub.f32 %v1795, 1.0
      %v1913 = vsub.f32 %v1797, 1.0
      %v1914 = vsub.f32 %v1799, 1.0
      %v1915 = vsub.f32 %v1801, 1.0
      %v1916 = vsub.f32 %v1803, 1.0
      %v1917 = vsub.f32 %v1805, 1.0
      %v1918 = vsub.f32 %v1807, 1.0
      %v1919 = vsub.f32 %v1809, 1.0
      %v1920 = vsub.f32 %v1811, 1.0
      %v1921 = vsub.f32 %v1813, 1.0
      %v1922 = vsub.f32 %v1815, 1.0
      %v1923 = vsub.f32 %v1817, 1.0
      %v1924 = vsub.f32 %v1819, 1.0
      %v1925 = vsub.f32 %v1821, 1.0
      %v1926 = vsub.f32 %v1823, 1.0
      %v1927 = vsub.f32 %v1825, 1.0
      %v1928 = vsub.f32 %v1827, 1.0
      %v1929 = vsub.f32 %v1829, 1.0
      %v1930 = vsub.f32 %v1831, 1.0
      %v1931 = vsub.f32 %v1833, 1.0
      %v1932 = vsub.f32 %v1835, 1.0
      %v1933 = vsub.f32 %v1837, 1.0
      %v1934 = vsub.f32 %v1839, 1.0
      %v1935 = vsub.f32 %v1841, 1.0
      %v1936 = vsub.f32 %v1843, 1.0
      %v1937 = vsub.f32 %v1845, 1.0
      %v1938 = vsub.f32 %v1847, 1.0
      %v1939 = vsub.f32 %v1849, 1.0
      %v1940 = vsub.f32 %v1851, 1.0
      %v1941 = vsub.f32 %v1853, 1.0
      %v1942 = vsub.f32 %v1855, 1.0
      %v1943 = vsub.f32 %v1857, 1.0
      %v1944 = vsub.f32 %v1859, 1.0
      %v1945 = vsub.f32 %v1861, 1.0
      %v1946 = vsub.f32 %v1863, 1.0
      %v1947 = vsub.f32 %v1865, 1.0
      %v1948 = vsub.f32 %v1867, 1.0
      %v1949 = vsub.f32 %v1869, 1.0
      %v1950 = vsub.f32 %v1871, 1.0
      %v1951 = vsub.f32 %v1873, 1.0
      %v1952 = vsub.f32 %v1875, 1.0
      %v1953 = vsub.f32 %v1877, 1.0
      %v1954 = vsub.f32 %v1879, 1.0
      %v1955 = vsub.f32 %v1881, 1.0
      %v1956 = vsub.f32 %v1883, 1.0
      %v1957 = vsub.f32 %v1885, 1.0
      %v1958 = vsub.f32 %v1887, 1.0
      %v1959 = vsub.f32 %v1889, 1.0
      %v1960 = vsub.f32 %v1891, 1.0
      %v1961 = vsub.f32 %v1893, 1.0
      %v1962 = vsub.f32 %v1895, 1.0
      %v1963 = vsub.f32 %v1897, 1.0
      %v1964 = vsub.f32 %v1899, 1.0
      %v1965 = vsub.f32 %v1901, 1.0
      %v1966 = vmul.f32 %v1902, 1.6732632
      %v1967 = vmul.f32 %v1903, 1.6732632
      %v1968 = vmul.f32 %v1904, 1.6732632
      %v1969 = vmul.f32 %v1905, 1.6732632
      %v1970 = vmul.f32 %v1906, 1.6732632
      %v1971 = vmul.f32 %v1907, 1.6732632
      %v1972 = vmul.f32 %v1908, 1.6732632
      %v1973 = vmul.f32 %v1909, 1.6732632
      %v1974 = vmul.f32 %v1910, 1.6732632
      %v1975 = vmul.f32 %v1911, 1.6732632
      %v1976 = vmul.f32 %v1912, 1.6732632
      %v1977 = vmul.f32 %v1913, 1.6732632
      %v1978 = vmul.f32 %v1914, 1.6732632
      %v1979 = vmul.f32 %v1915, 1.6732632
      %v1980 = vmul.f32 %v1916, 1.6732632
      %v1981 = vmul.f32 %v1917, 1.6732632
      %v1982 = vmul.f32 %v1918, 1.6732632
      %v1983 = vmul.f32 %v1919, 1.6732632
      %v1984 = vmul.f32 %v1920, 1.6732632
      %v1985 = vmul.f32 %v1921, 1.6732632
      %v1986 = vmul.f32 %v1922, 1.6732632
      %v1987 = vmul.f32 %v1923, 1.6732632
      %v1988 = vmul.f32 %v1924, 1.6732632
      %v1989 = vmul.f32 %v1925, 1.6732632
      %v1990 = vmul.f32 %v1926, 1.6732632
      %v1991 = vmul.f32 %v1927, 1.6732632
      %v1992 = vmul.f32 %v1928, 1.6732632
      %v1993 = vmul.f32 %v1929, 1.6732632
      %v1994 = vmul.f32 %v1930, 1.6732632
      %v1995 = vmul.f32 %v1931, 1.6732632
      %v1996 = vmul.f32 %v1932, 1.6732632
      %v1997 = vmul.f32 %v1933, 1.6732632
      %v1998 = vmul.f32 %v1934, 1.6732632
      %v1999 = vmul.f32 %v1935, 1.6732632
      %v2000 = vmul.f32 %v1936, 1.6732632
      %v2001 = vmul.f32 %v1937, 1.6732632
      %v2002 = vmul.f32 %v1938, 1.6732632
      %v2003 = vmul.f32 %v1939, 1.6732632
      %v2004 = vmul.f32 %v1940, 1.6732632
      %v2005 = vmul.f32 %v1941, 1.6732632
      %v2006 = vmul.f32 %v1942, 1.6732632
      %v2007 = vmul.f32 %v1943, 1.6732632
      %v2008 = vmul.f32 %v1944, 1.6732632
      %v2009 = vmul.f32 %v1945, 1.6732632
      %v2010 = vmul.f32 %v1946, 1.6732632
      %v2011 = vmul.f32 %v1947, 1.6732632
      %v2012 = vmul.f32 %v1948, 1.6732632
      %v2013 = vmul.f32 %v1949, 1.6732632
      %v2014 = vmul.f32 %v1950, 1.6732632
      %v2015 = vmul.f32 %v1951, 1.6732632
      %v2016 = vmul.f32 %v1952, 1.6732632
      %v2017 = vmul.f32 %v1953, 1.6732632
      %v2018 = vmul.f32 %v1954, 1.6732632
      %v2019 = vmul.f32 %v1955, 1.6732632
      %v2020 = vmul.f32 %v1956, 1.6732632
      %v2021 = vmul.f32 %v1957, 1.6732632
      %v2022 = vmul.f32 %v1958, 1.6732632
      %v2023 = vmul.f32 %v1959, 1.6732632
      %v2024 = vmul.f32 %v1960, 1.6732632
      %v2025 = vmul.f32 %v1961, 1.6732632
      %v2026 = vmul.f32 %v1962, 1.6732632
      %v2027 = vmul.f32 %v1963, 1.6732632
      %v2028 = vmul.f32 %v1964, 1.6732632
      %v2029 = vmul.f32 %v1965, 1.6732632
      %v2030 = vsel %vm1646, %v1488, %v1966
      %v2031 = vsel %vm1647, %v1490, %v1967
      %v2032 = vsel %vm1648, %v1492, %v1968
      %v2033 = vsel %vm1649, %v1494, %v1969
      %v2034 = vsel %vm1650, %v1498, %v1970
      %v2035 = vsel %vm1651, %v1500, %v1971
      %v2036 = vsel %vm1652, %v1502, %v1972
      %v2037 = vsel %vm1653, %v1504, %v1973
      %v2038 = vsel %vm1654, %v1508, %v1974
      %v2039 = vsel %vm1655, %v1510, %v1975
      %v2040 = vsel %vm1656, %v1512, %v1976
      %v2041 = vsel %vm1657, %v1514, %v1977
      %v2042 = vsel %vm1658, %v1518, %v1978
      %v2043 = vsel %vm1659, %v1520, %v1979
      %v2044 = vsel %vm1660, %v1522, %v1980
      %v2045 = vsel %vm1661, %v1524, %v1981
      %v2046 = vsel %vm1662, %v1528, %v1982
      %v2047 = vsel %vm1663, %v1530, %v1983
      %v2048 = vsel %vm1664, %v1532, %v1984
      %v2049 = vsel %vm1665, %v1534, %v1985
      %v2050 = vsel %vm1666, %v1538, %v1986
      %v2051 = vsel %vm1667, %v1540, %v1987
      %v2052 = vsel %vm1668, %v1542, %v1988
      %v2053 = vsel %vm1669, %v1544, %v1989
      %v2054 = vsel %vm1670, %v1548, %v1990
      %v2055 = vsel %vm1671, %v1550, %v1991
      %v2056 = vsel %vm1672, %v1552, %v1992
      %v2057 = vsel %vm1673, %v1554, %v1993
      %v2058 = vsel %vm1674, %v1558, %v1994
      %v2059 = vsel %vm1675, %v1560, %v1995
      %v2060 = vsel %vm1676, %v1562, %v1996
      %v2061 = vsel %vm1677, %v1564, %v1997
      %v2062 = vsel %vm1678, %v1568, %v1998
      %v2063 = vsel %vm1679, %v1570, %v1999
      %v2064 = vsel %vm1680, %v1572, %v2000
      %v2065 = vsel %vm1681, %v1574, %v2001
      %v2066 = vsel %vm1682, %v1578, %v2002
      %v2067 = vsel %vm1683, %v1580, %v2003
      %v2068 = vsel %vm1684, %v1582, %v2004
      %v2069 = vsel %vm1685, %v1584, %v2005
      %v2070 = vsel %vm1686, %v1588, %v2006
      %v2071 = vsel %vm1687, %v1590, %v2007
      %v2072 = vsel %vm1688, %v1592, %v2008
      %v2073 = vsel %vm1689, %v1594, %v2009
      %v2074 = vsel %vm1690, %v1598, %v2010
      %v2075 = vsel %vm1691, %v1600, %v2011
      %v2076 = vsel %vm1692, %v1602, %v2012
      %v2077 = vsel %vm1693, %v1604, %v2013
      %v2078 = vsel %vm1694, %v1608, %v2014
      %v2079 = vsel %vm1695, %v1610, %v2015
      %v2080 = vsel %vm1696, %v1612, %v2016
      %v2081 = vsel %vm1697, %v1614, %v2017
      %v2082 = vsel %vm1698, %v1618, %v2018
      %v2083 = vsel %vm1699, %v1620, %v2019
      %v2084 = vsel %vm1700, %v1622, %v2020
      %v2085 = vsel %vm1701, %v1624, %v2021
      %v2086 = vsel %vm1702, %v1628, %v2022
      %v2087 = vsel %vm1703, %v1630, %v2023
      %v2088 = vsel %vm1704, %v1632, %v2024
      %v2089 = vsel %vm1705, %v1634, %v2025
      %v2090 = vsel %vm1706, %v1638, %v2026
      %v2091 = vsel %vm1707, %v1640, %v2027
      %v2092 = vsel %vm1708, %v1642, %v2028
      %v2093 = vsel %vm1709, %v1644, %v2029
      %v2094 = vmul.f32 %v2030, 1.050701
      %v2095 = vmul.f32 %v2031, 1.050701
      %v2096 = vmul.f32 %v2032, 1.050701
      %v2097 = vmul.f32 %v2033, 1.050701
      %v2098 = vmul.f32 %v2034, 1.050701
      %v2099 = vmul.f32 %v2035, 1.050701
      %v2100 = vmul.f32 %v2036, 1.050701
      %v2101 = vmul.f32 %v2037, 1.050701
      %v2102 = vmul.f32 %v2038, 1.050701
      %v2103 = vmul.f32 %v2039, 1.050701
      %v2104 = vmul.f32 %v2040, 1.050701
      %v2105 = vmul.f32 %v2041, 1.050701
      %v2106 = vmul.f32 %v2042, 1.050701
      %v2107 = vmul.f32 %v2043, 1.050701
      %v2108 = vmul.f32 %v2044, 1.050701
      %v2109 = vmul.f32 %v2045, 1.050701
      %v2110 = vmul.f32 %v2046, 1.050701
      %v2111 = vmul.f32 %v2047, 1.050701
      %v2112 = vmul.f32 %v2048, 1.050701
      %v2113 = vmul.f32 %v2049, 1.050701
      %v2114 = vmul.f32 %v2050, 1.050701
      %v2115 = vmul.f32 %v2051, 1.050701
      %v2116 = vmul.f32 %v2052, 1.050701
      %v2117 = vmul.f32 %v2053, 1.050701
      %v2118 = vmul.f32 %v2054, 1.050701
      %v2119 = vmul.f32 %v2055, 1.050701
      %v2120 = vmul.f32 %v2056, 1.050701
      %v2121 = vmul.f32 %v2057, 1.050701
      %v2122 = vmul.f32 %v2058, 1.050701
      %v2123 = vmul.f32 %v2059, 1.050701
      %v2124 = vmul.f32 %v2060, 1.050701
      %v2125 = vmul.f32 %v2061, 1.050701
      %v2126 = vmul.f32 %v2062, 1.050701
      %v2127 = vmul.f32 %v2063, 1.050701
      %v2128 = vmul.f32 %v2064, 1.050701
      %v2129 = vmul.f32 %v2065, 1.050701
      %v2130 = vmul.f32 %v2066, 1.050701
      %v2131 = vmul.f32 %v2067, 1.050701
      %v2132 = vmul.f32 %v2068, 1.050701
      %v2133 = vmul.f32 %v2069, 1.050701
      %v2134 = vmul.f32 %v2070, 1.050701
      %v2135 = vmul.f32 %v2071, 1.050701
      %v2136 = vmul.f32 %v2072, 1.050701
      %v2137 = vmul.f32 %v2073, 1.050701
      %v2138 = vmul.f32 %v2074, 1.050701
      %v2139 = vmul.f32 %v2075, 1.050701
      %v2140 = vmul.f32 %v2076, 1.050701
      %v2141 = vmul.f32 %v2077, 1.050701
      %v2142 = vmul.f32 %v2078, 1.050701
      %v2143 = vmul.f32 %v2079, 1.050701
      %v2144 = vmul.f32 %v2080, 1.050701
      %v2145 = vmul.f32 %v2081, 1.050701
      %v2146 = vmul.f32 %v2082, 1.050701
      %v2147 = vmul.f32 %v2083, 1.050701
      %v2148 = vmul.f32 %v2084, 1.050701
      %v2149 = vmul.f32 %v2085, 1.050701
      %v2150 = vmul.f32 %v2086, 1.050701
      %v2151 = vmul.f32 %v2087, 1.050701
      %v2152 = vmul.f32 %v2088, 1.050701
      %v2153 = vmul.f32 %v2089, 1.050701
      %v2154 = vmul.f32 %v2090, 1.050701
      %v2155 = vmul.f32 %v2091, 1.050701
      %v2156 = vmul.f32 %v2092, 1.050701
      %v2157 = vmul.f32 %v2093, 1.050701
      %2158 = vst [vmem:[%s282] sm:$0xff] %v2094
      %vm2159 = vcmask 97280
      %2160 = vst.msk [vmem:[%s282 + $0x8] sm:$0xff] %vm2159, %v2095
      %2161 = vst [vmem:[%s282 + $0x10] sm:$0xff] %v2096
      %2162 = vst.msk [vmem:[%s282 + $0x18] sm:$0xff] %vm2159, %v2097
      %2163 = vst [vmem:[%s282 + $0x20] sm:$0xff] %v2098
      %2164 = vst.msk [vmem:[%s282 + $0x28] sm:$0xff] %vm2159, %v2099
      %2165 = vst [vmem:[%s282 + $0x30] sm:$0xff] %v2100
      %2166 = vst.msk [vmem:[%s282 + $0x38] sm:$0xff] %vm2159, %v2101
      %2167 = vst [vmem:[%s282 + $0x40] sm:$0xff] %v2102
      %2168 = vst.msk [vmem:[%s282 + $0x48] sm:$0xff] %vm2159, %v2103
      %2169 = vst [vmem:[%s282 + $0x50] sm:$0xff] %v2104
      %2170 = vst.msk [vmem:[%s282 + $0x58] sm:$0xff] %vm2159, %v2105
      %2171 = vst [vmem:[%s282 + $0x60] sm:$0xff] %v2106
      %2172 = vst.msk [vmem:[%s282 + $0x68] sm:$0xff] %vm2159, %v2107
      %2173 = vst [vmem:[%s282 + $0x70] sm:$0xff] %v2108
      %2174 = vst.msk [vmem:[%s282 + $0x78] sm:$0xff] %vm2159, %v2109
      %2175 = vst [vmem:[%s282 + $0x80] sm:$0xff] %v2110
      %2176 = vst.msk [vmem:[%s282 + $0x88] sm:$0xff] %vm2159, %v2111
      %2177 = vst [vmem:[%s282 + $0x90] sm:$0xff] %v2112
      %2178 = vst.msk [vmem:[%s282 + $0x98] sm:$0xff] %vm2159, %v2113
      %2179 = vst [vmem:[%s282 + $0xa0] sm:$0xff] %v2114
      %2180 = vst.msk [vmem:[%s282 + $0xa8] sm:$0xff] %vm2159, %v2115
      %2181 = vst [vmem:[%s282 + $0xb0] sm:$0xff] %v2116
      %2182 = vst.msk [vmem:[%s282 + $0xb8] sm:$0xff] %vm2159, %v2117
      %2183 = vst [vmem:[%s282 + $0xc0] sm:$0xff] %v2118
      %2184 = vst.msk [vmem:[%s282 + $0xc8] sm:$0xff] %vm2159, %v2119
      %2185 = vst [vmem:[%s282 + $0xd0] sm:$0xff] %v2120
      %2186 = vst.msk [vmem:[%s282 + $0xd8] sm:$0xff] %vm2159, %v2121
      %2187 = vst [vmem:[%s282 + $0xe0] sm:$0xff] %v2122
      %2188 = vst.msk [vmem:[%s282 + $0xe8] sm:$0xff] %vm2159, %v2123
      %2189 = vst [vmem:[%s282 + $0xf0] sm:$0xff] %v2124
      %2190 = vst.msk [vmem:[%s282 + $0xf8] sm:$0xff] %vm2159, %v2125
      %2191 = vst [vmem:[%s282 + $0x100] sm:$0xff] %v2126
      %2192 = vst.msk [vmem:[%s282 + $0x108] sm:$0xff] %vm2159, %v2127
      %2193 = vst [vmem:[%s282 + $0x110] sm:$0xff] %v2128
      %2194 = vst.msk [vmem:[%s282 + $0x118] sm:$0xff] %vm2159, %v2129
      %2195 = vst [vmem:[%s282 + $0x120] sm:$0xff] %v2130
      %2196 = vst.msk [vmem:[%s282 + $0x128] sm:$0xff] %vm2159, %v2131
      %2197 = vst [vmem:[%s282 + $0x130] sm:$0xff] %v2132
      %2198 = vst.msk [vmem:[%s282 + $0x138] sm:$0xff] %vm2159, %v2133
      %2199 = vst [vmem:[%s282 + $0x140] sm:$0xff] %v2134
      %2200 = vst.msk [vmem:[%s282 + $0x148] sm:$0xff] %vm2159, %v2135
      %2201 = vst [vmem:[%s282 + $0x150] sm:$0xff] %v2136
      %2202 = vst.msk [vmem:[%s282 + $0x158] sm:$0xff] %vm2159, %v2137
      %2203 = vst [vmem:[%s282 + $0x160] sm:$0xff] %v2138
      %2204 = vst.msk [vmem:[%s282 + $0x168] sm:$0xff] %vm2159, %v2139
      %2205 = vst [vmem:[%s282 + $0x170] sm:$0xff] %v2140
      %2206 = vst.msk [vmem:[%s282 + $0x178] sm:$0xff] %vm2159, %v2141
      %2207 = vst [vmem:[%s282 + $0x180] sm:$0xff] %v2142
      %2208 = vst.msk [vmem:[%s282 + $0x188] sm:$0xff] %vm2159, %v2143
      %2209 = vst [vmem:[%s282 + $0x190] sm:$0xff] %v2144
      %2210 = vst.msk [vmem:[%s282 + $0x198] sm:$0xff] %vm2159, %v2145
      %2211 = vst [vmem:[%s282 + $0x1a0] sm:$0xff] %v2146
      %2212 = vst.msk [vmem:[%s282 + $0x1a8] sm:$0xff] %vm2159, %v2147
      %2213 = vst [vmem:[%s282 + $0x1b0] sm:$0xff] %v2148
      %2214 = vst.msk [vmem:[%s282 + $0x1b8] sm:$0xff] %vm2159, %v2149
      %2215 = vst [vmem:[%s282 + $0x1c0] sm:$0xff] %v2150
      %2216 = vst.msk [vmem:[%s282 + $0x1c8] sm:$0xff] %vm2159, %v2151
      %2217 = vst [vmem:[%s282 + $0x1d0] sm:$0xff] %v2152
      %2218 = vst.msk [vmem:[%s282 + $0x1d8] sm:$0xff] %vm2159, %v2153
      %2219 = vst [vmem:[%s282 + $0x1e0] sm:$0xff] %v2154
      %2220 = vst.msk [vmem:[%s282 + $0x1e8] sm:$0xff] %vm2159, %v2155
      %2221 = vst [vmem:[%s282 + $0x1f0] sm:$0xff] %v2156
      %2222 = vst.msk [vmem:[%s282 + $0x1f8] sm:$0xff] %vm2159, %v2157
      %s2223 = smul.u32 32, %s18
      %p2224 = scmp.lt.s32.totalorder %s2223, 63
      %s2225 = scalar_select %p2224, %s2223, 63
      %s2226 = smul.addr %s2225, 2
      %s2227 = smul.addr %s2226, 8
      %s2228 = scalar_lea.vmem %s7, %s2227
      // Predicated region
      $region49: #{decoder_forward.1} parent=47 // pred_check
        %p2229 = pneg %p188
      $region50: #{decoder_forward.1} parent=47 // pred_check_branch
        %2231 = sbr.rel (%p2229) target = $region52
      $region51: #{decoder_forward.1} parent=47 // pred_region
        %s2232 = smul.u32 32, %s18
      $region52: #{decoder_forward.1} parent=47 // pred_fallthru
        _
    $region48: #{decoder_forward.1} parent=5 // pred_fallthru
      _
    %p2233 = scmp.le.s32.totalorder 2, %s13
    // Predicated region
    $region53: #{decoder_forward.1} parent=5 // pred_check
      %p2234 = pneg %p2233
    $region54: #{decoder_forward.1} parent=5 // pred_check_branch
      %2236 = sbr.rel (%p2234) target = $region56
    $region55: #{decoder_forward.1} parent=5 // pred_region
      %s2237 = ssub.s32 %s13, 2
      // Predicated region
      $region57: #{decoder_forward.1} parent=55 // pred_check
        %p2238 = pneg %p194
      $region58: #{decoder_forward.1} parent=55 // pred_check_branch
        %2240 = sbr.rel (%p2238) target = $region60
      $region59: #{decoder_forward.1} parent=55 // pred_region
        %s2241 = smul.u32 32, %s19
        %p2242 = scmp.lt.s32.totalorder %s2241, 63
        %s2243 = scalar_select %p2242, %s2241, 63
        %s2244 = smul.addr %s2243, 2
        %s2245 = smul.addr %s2244, 8
        %s2246 = scalar_lea.vmem %s7, %s2245
      $region60: #{decoder_forward.1} parent=55 // pred_fallthru
        _
    $region56: #{decoder_forward.1} parent=5 // pred_fallthru
      _
  $region6: #{decoder_forward.1} parent=0 // loop_footer
    %s17 = sadd.s32 1, %s13
  $region7: #{decoder_forward.1} parent=0 // loop_footer_branch
    %12 = sbr.rel target = $region3
  $region8: #{decoder_forward.1} parent=0 // loop_exit
    _

</llo_original>
